<compile_context>
chip_gen: v7x
topology: tpu7x:2x2x1
jax: 0.10.0
libtpu: 0.0.40
codegen_flags: <defaults>
</compile_context>

<pallas_src>
import functools

import jax
import jax.numpy as jnp
from jax.experimental import pallas as pl
from jax.experimental.pallas import tpu as pltpu

N_OUT_PAD = 128   # fc3 out-features 10 -> 128: one full lane width, unmasked stores
TB_MAX = 1024     # max batch-tile rows (sweep 512-1024; VMEM budget checked below)


def _round_up(x, m):
    return (x + m - 1) // m * m


def _mlp_kernel(x_ref, w1_ref, b1_ref, w2_ref, b2_ref, w3_ref, b3_ref, o_ref):
    # x arrives as f32 straight from HBM; cast to bf16 in-kernel (no extra XLA pass).
    x = x_ref[...].astype(jnp.bfloat16)                                   # (TB, 784)

    # fc1 + relu (f32 accumulation, bf16 activations)
    h1 = jnp.dot(x, w1_ref[...], preferred_element_type=jnp.float32) + b1_ref[...]
    h1 = jnp.maximum(h1, 0.0).astype(jnp.bfloat16)                        # (TB, 512)

    # fc2 with the low-rank branch folded in + relu
    h2 = jnp.dot(h1, w2_ref[...], preferred_element_type=jnp.float32) + b2_ref[...]
    h2 = jnp.maximum(h2, 0.0).astype(jnp.bfloat16)                        # (TB, 256)

    # fc3 (no activation); lane-dense bf16 store (only cols :10 are meaningful)
    out = jnp.dot(h2, w3_ref[...], preferred_element_type=jnp.float32) + b3_ref[...]
    o_ref[...] = out.astype(o_ref.dtype)                                  # (TB, 128)


def prepare_params(p):
    """Fold / pad / cast the logical params into kernel-ready arrays (do once)."""
    # Fold the low-rank residual branch into fc2 (exact linear algebra, in f32).
    w2f = p["w2"] + p["wu"] @ p["wd"]                      # (512, 256)
    b2f = p["b2"] + p["bu"] @ p["wd"] + p["bd"]            # (1, 256)

    # Pad fc3 out-features 10 -> 128 with zero columns (lane-dense output store).
    w3p = jnp.zeros((256, N_OUT_PAD), jnp.float32).at[:, :10].set(p["w3"])
    b3p = jnp.zeros((1, N_OUT_PAD), jnp.float32).at[:, :10].set(p["b3"])

    return dict(
        w1=p["w1"].astype(jnp.bfloat16), b1=p["b1"].astype(jnp.float32),
        w2=w2f.astype(jnp.bfloat16), b2=b2f.astype(jnp.float32),
        w3=w3p.astype(jnp.bfloat16), b3=b3p.astype(jnp.float32),
    )


@functools.partial(jax.jit, static_argnames=("tb_max",))
def simple_dnn_2(x_nchw, kp, tb_max=TB_MAX):
    """x_nchw: (B, 1, 28, 28) float32.  kp: output of prepare_params()."""
    # NOTE: for repeated tiny-batch calls the ~1.25 MB resident-weight DMA is
    # fully exposed and dominates latency; batch requests, or add a cross-call
    # weight-prefetch prologue (semaphore/VMEM outputs, P10) if that becomes
    # the serving bottleneck.
    B = x_nchw.shape[0]
    x = x_nchw.reshape(B, 784).astype(jnp.float32)

    # Balanced batch tiles: at most tb_max rows, rounded to 16 (bf16 sublane
    # pack), and at least 2 (up to 4) tiles once B is large enough so v7x's two
    # TensorCores both get work.  Any partial last tile is masked by Pallas;
    # compute is row-independent so overhang rows never leak into real outputs.
    n_tiles = max(pl.cdiv(B, tb_max), min(4, pl.cdiv(B, 256)), 1)
    tb = min(_round_up(pl.cdiv(B, n_tiles), 16), _round_up(B, 8))
    grid = (pl.cdiv(B, tb),)

    const = lambda shape: pl.BlockSpec(shape, lambda i: (0, 0))

    out = pl.pallas_call(
        _mlp_kernel,
        out_shape=jax.ShapeDtypeStruct((B, N_OUT_PAD), jnp.bfloat16),
        grid=grid,
        in_specs=[
            pl.BlockSpec((tb, 784), lambda i: (i, 0)),      # x tile: pipelined over batch
            const(kp["w1"].shape), const(kp["b1"].shape),   # weights/biases: VMEM-resident
            const(kp["w2"].shape), const(kp["b2"].shape),
            const(kp["w3"].shape), const(kp["b3"].shape),
        ],
        out_specs=pl.BlockSpec((tb, N_OUT_PAD), lambda i: (i, 0)),
        compiler_params=pltpu.CompilerParams(
            dimension_semantics=("parallel",),              # shard tiles over v7x's 2 TCs
            vmem_limit_bytes=32 * 1024 * 1024,              # tb=1024 f32 x tiles exceed v5e's 16 MiB default
        ),
    )(x, kp["w1"], kp["b1"], kp["w2"], kp["b2"], kp["w3"], kp["b3"])

    # Only the first 10 lanes are real logits; tiny slice back to f32.
    return out[:, :10].astype(jnp.float32)


def _init_linear(key, fan_in, fan_out):
    """Mimic nn.Linear default init: U(-1/sqrt(fan_in), 1/sqrt(fan_in)); stored as (in, out)."""
    kw, kb = jax.random.split(key)
    bound = 1.0 / jnp.sqrt(fan_in)
    w = jax.random.uniform(kw, (fan_in, fan_out), jnp.float32, -bound, bound)
    b = jax.random.uniform(kb, (1, fan_out), jnp.float32, -bound, bound)
    return w, b


def make_params(key):
    ks = jax.random.split(key, 6)
    w1, b1 = _init_linear(ks[0], 784, 512)
    w2, b2 = _init_linear(ks[1], 512, 256)
    w3, b3 = _init_linear(ks[2], 256, 10)
    # up: normal(std=0.01) weight, uniform(0,1) bias
    wu = 0.01 * jax.random.normal(ks[3], (512, 10), jnp.float32)
    bu = jax.random.uniform(ks[4], (1, 10), jnp.float32, 0.0, 1.0)
    # down: normal(std=0.01) weight, uniform(0,1) bias
    kd1, kd2 = jax.random.split(ks[5])
    wd = 0.01 * jax.random.normal(kd1, (10, 256), jnp.float32)
    bd = jax.random.uniform(kd2, (1, 256), jnp.float32, 0.0, 1.0)
    return dict(w1=w1, b1=b1, w2=w2, b2=b2, wu=wu, bu=bu, wd=wd, bd=bd, w3=w3, b3=b3)


def _reference(x_nchw, p):
    """Pure-JAX f32 reference with the original (unfolded) structure."""
    x = x_nchw.reshape(x_nchw.shape[0], 784)
    h1 = jax.nn.relu(x @ p["w1"] + p["b1"])
    h2 = jax.nn.relu((h1 @ p["w2"] + p["b2"]) + ((h1 @ p["wu"] + p["bu"]) @ p["wd"] + p["bd"]))
    return h2 @ p["w3"] + p["b3"]


if __name__ == "__main__":
    key = jax.random.PRNGKey(0)
    k_x, k_p = jax.random.split(key)

    B = 8  # small batch for the smoke test
    x = jax.random.normal(k_x, (B, 1, 28, 28), jnp.float32)  # NCHW, like MNIST
    params = make_params(k_p)
    kparams = prepare_params(params)

    out = jax.block_until_ready(simple_dnn_2(x, kparams))
    ref = _reference(x, params)

    assert out.shape == (B, 10)
    # bf16 weights/activations/output (f32 accumulation) -> loosened tolerance vs f32 reference.
    assert jnp.allclose(out, ref, atol=5e-2, rtol=5e-2), (
        f"mismatch vs reference, max abs err {jnp.max(jnp.abs(out - ref))}")

    print("KERNEL_OK")
</pallas_src>

<mosaic_0001>
module attributes {stable_mosaic.version = 11 : i64} {
  func.func @_mlp_kernel(%arg0: i32, %arg1: memref<8x784xf32, #tpu.memory_space<vmem>>, %arg2: memref<784x512xbf16, #tpu.memory_space<vmem>>, %arg3: memref<1x512xf32, #tpu.memory_space<vmem>>, %arg4: memref<512x256xbf16, #tpu.memory_space<vmem>>, %arg5: memref<1x256xf32, #tpu.memory_space<vmem>>, %arg6: memref<256x128xbf16, #tpu.memory_space<vmem>>, %arg7: memref<1x128xf32, #tpu.memory_space<vmem>>, %arg8: memref<8x128xbf16, #tpu.memory_space<vmem>>) attributes {dimension_semantics = [#tpu.dimension_semantics<parallel>], iteration_bounds = array<i64: 1>, scalar_prefetch = 0 : i64, scratch_operands = 0 : i64, tpu.core_type = #tpu.core_type<tc>, window_params = [{transform_indices = @transform_0, window_bounds = array<i64: 8, 784>}, {pipeline_mode = #tpu.pipeline_mode<synchronous>, transform_indices = @transform_1, window_bounds = array<i64: 784, 512>}, {pipeline_mode = #tpu.pipeline_mode<synchronous>, transform_indices = @transform_2, window_bounds = array<i64: 1, 512>}, {pipeline_mode = #tpu.pipeline_mode<synchronous>, transform_indices = @transform_3, window_bounds = array<i64: 512, 256>}, {pipeline_mode = #tpu.pipeline_mode<synchronous>, transform_indices = @transform_4, window_bounds = array<i64: 1, 256>}, {pipeline_mode = #tpu.pipeline_mode<synchronous>, transform_indices = @transform_5, window_bounds = array<i64: 256, 128>}, {pipeline_mode = #tpu.pipeline_mode<synchronous>, transform_indices = @transform_6, window_bounds = array<i64: 1, 128>}, {transform_indices = @transform_7, window_bounds = array<i64: 8, 128>}]} {
    %c0 = arith.constant 0 : index
    %c0_0 = arith.constant 0 : index
    %0 = vector.load %arg1[%c0, %c0_0] : memref<8x784xf32, #tpu.memory_space<vmem>>, vector<8x784xf32>
    %1 = arith.truncf %0 : vector<8x784xf32> to vector<8x784xbf16>
    %c0_1 = arith.constant 0 : index
    %c0_2 = arith.constant 0 : index
    %2 = vector.load %arg2[%c0_1, %c0_2] : memref<784x512xbf16, #tpu.memory_space<vmem>>, vector<784x512xbf16>
    %cst = arith.constant dense<0.000000e+00> : vector<8x512xf32>
    %3 = tpu.matmul %1, %2, %cst {dimension_numbers = #tpu.dot_dimension_numbers<[1], [0], [0], [1], [0, 0, 1, 1], [], []>} : vector<8x784xbf16>, vector<784x512xbf16>, vector<8x512xf32> -> vector<8x512xf32>
    %c0_3 = arith.constant 0 : index
    %c0_4 = arith.constant 0 : index
    %4 = vector.load %arg3[%c0_3, %c0_4] : memref<1x512xf32, #tpu.memory_space<vmem>>, vector<1x512xf32>
    %5 = vector.broadcast %4 : vector<1x512xf32> to vector<8x512xf32>
    %6 = arith.addf %3, %5 : vector<8x512xf32>
    %cst_5 = arith.constant 0.000000e+00 : f32
    %7 = vector.broadcast %cst_5 : f32 to vector<8x512xf32>
    %8 = arith.maximumf %6, %7 : vector<8x512xf32>
    %9 = arith.truncf %8 : vector<8x512xf32> to vector<8x512xbf16>
    %c0_6 = arith.constant 0 : index
    %c0_7 = arith.constant 0 : index
    %10 = vector.load %arg4[%c0_6, %c0_7] : memref<512x256xbf16, #tpu.memory_space<vmem>>, vector<512x256xbf16>
    %cst_8 = arith.constant dense<0.000000e+00> : vector<8x256xf32>
    %11 = tpu.matmul %9, %10, %cst_8 {dimension_numbers = #tpu.dot_dimension_numbers<[1], [0], [0], [1], [0, 0, 1, 1], [], []>} : vector<8x512xbf16>, vector<512x256xbf16>, vector<8x256xf32> -> vector<8x256xf32>
    %c0_9 = arith.constant 0 : index
    %c0_10 = arith.constant 0 : index
    %12 = vector.load %arg5[%c0_9, %c0_10] : memref<1x256xf32, #tpu.memory_space<vmem>>, vector<1x256xf32>
    %13 = vector.broadcast %12 : vector<1x256xf32> to vector<8x256xf32>
    %14 = arith.addf %11, %13 : vector<8x256xf32>
    %cst_11 = arith.constant 0.000000e+00 : f32
    %15 = vector.broadcast %cst_11 : f32 to vector<8x256xf32>
    %16 = arith.maximumf %14, %15 : vector<8x256xf32>
    %17 = arith.truncf %16 : vector<8x256xf32> to vector<8x256xbf16>
    %c0_12 = arith.constant 0 : index
    %c0_13 = arith.constant 0 : index
    %18 = vector.load %arg6[%c0_12, %c0_13] : memref<256x128xbf16, #tpu.memory_space<vmem>>, vector<256x128xbf16>
    %cst_14 = arith.constant dense<0.000000e+00> : vector<8x128xf32>
    %19 = tpu.matmul %17, %18, %cst_14 {dimension_numbers = #tpu.dot_dimension_numbers<[1], [0], [0], [1], [0, 0, 1, 1], [], []>} : vector<8x256xbf16>, vector<256x128xbf16>, vector<8x128xf32> -> vector<8x128xf32>
    %c0_15 = arith.constant 0 : index
    %c0_16 = arith.constant 0 : index
    %20 = vector.load %arg7[%c0_15, %c0_16] : memref<1x128xf32, #tpu.memory_space<vmem>>, vector<1x128xf32>
    %21 = vector.broadcast %20 : vector<1x128xf32> to vector<8x128xf32>
    %22 = arith.addf %19, %21 : vector<8x128xf32>
    %23 = arith.truncf %22 : vector<8x128xf32> to vector<8x128xbf16>
    %c0_17 = arith.constant 0 : index
    %c0_18 = arith.constant 0 : index
    %24 = vector.load %arg8[%c0_17, %c0_18] : memref<8x128xbf16, #tpu.memory_space<vmem>>, vector<8x128xbf16>
    tpu.vector_store %arg8[%c0_17, %c0_18], %23 {strides = array<i32>} : memref<8x128xbf16, #tpu.memory_space<vmem>>, vector<8x128xbf16>,
    return
  }
  func.func @transform_0(%arg0: i32) -> (i32, i32) {
    %c0_i32 = arith.constant 0 : i32
    %c0_i32_0 = arith.constant 0 : i32
    return %arg0, %c0_i32 : i32, i32
  }
  func.func @transform_1(%arg0: i32) -> (i32, i32) {
    %c0_i32 = arith.constant 0 : i32
    %c0_i32_0 = arith.constant 0 : i32
    %c0_i32_1 = arith.constant 0 : i32
    return %c0_i32, %c0_i32_0 : i32, i32
  }
  func.func @transform_2(%arg0: i32) -> (i32, i32) {
    %c0_i32 = arith.constant 0 : i32
    %c0_i32_0 = arith.constant 0 : i32
    %c0_i32_1 = arith.constant 0 : i32
    return %c0_i32, %c0_i32_0 : i32, i32
  }
  func.func @transform_3(%arg0: i32) -> (i32, i32) {
    %c0_i32 = arith.constant 0 : i32
    %c0_i32_0 = arith.constant 0 : i32
    %c0_i32_1 = arith.constant 0 : i32
    return %c0_i32, %c0_i32_0 : i32, i32
  }
  func.func @transform_4(%arg0: i32) -> (i32, i32) {
    %c0_i32 = arith.constant 0 : i32
    %c0_i32_0 = arith.constant 0 : i32
    %c0_i32_1 = arith.constant 0 : i32
    return %c0_i32, %c0_i32_0 : i32, i32
  }
  func.func @transform_5(%arg0: i32) -> (i32, i32) {
    %c0_i32 = arith.constant 0 : i32
    %c0_i32_0 = arith.constant 0 : i32
    %c0_i32_1 = arith.constant 0 : i32
    return %c0_i32, %c0_i32_0 : i32, i32
  }
  func.func @transform_6(%arg0: i32) -> (i32, i32) {
    %c0_i32 = arith.constant 0 : i32
    %c0_i32_0 = arith.constant 0 : i32
    %c0_i32_1 = arith.constant 0 : i32
    return %c0_i32, %c0_i32_0 : i32, i32
  }
  func.func @transform_7(%arg0: i32) -> (i32, i32) {
    %c0_i32 = arith.constant 0 : i32
    %c0_i32_0 = arith.constant 0 : i32
    return %arg0, %c0_i32 : i32, i32
  }
}

</mosaic_0001>

<llo_original>
// kernel: simple_dnn_2.1
$region0: #{simple_dnn_2.1}
  #allocation0 [shape = 'u32[]', space=smem, size = 0x4, offset = 0x4, fixed_abs, tag = 'smem constant byte address 0x4 - core index']
  #allocation1 [shape = 'u32[144,128]{1,0:T(1,128)}', space=vmem, size = 0x12000, scoped, tag = 'internal scratch']
  %s0 = inlined_call_operand.vmem [shape: f32[8,784], index: 0, kind: input, shape index: {}]
  %s1 = inlined_call_operand.hbm [shape: bf16[784,512], index: 1, kind: input, shape index: {}]
  %s2 = inlined_call_operand.vmem [shape: f32[1,512], index: 2, kind: input, shape index: {}]
  %s3 = inlined_call_operand.vmem [shape: bf16[512,256], index: 3, kind: input, shape index: {}]
  %s4 = inlined_call_operand.vmem [shape: f32[1,256], index: 4, kind: input, shape index: {}]
  %s5 = inlined_call_operand.vmem [shape: bf16[256,128], index: 5, kind: input, shape index: {}]
  %s6 = inlined_call_operand.vmem [shape: f32[1,128], index: 6, kind: input, shape index: {}]
  %s7 = inlined_call_operand.vmem [shape: bf16[8,128], index: 7, kind: output, shape index: {}]
  %s8 = sld [smem:[#allocation0]]
  $region42: #{simple_dnn_2.1} parent=0
    _
  %s10 = ssub.s32 1, %s8
  %s11 = scalar_select 0, %s10, %s8
  $region1: #{simple_dnn_2.1} parent=0
    #allocation2 [shape = 'u8[802816]{0}', space=vmem, size = 0xc4000, scoped, tag = 'input window, operand 1, single buffered']
    #allocation3 [shape = 's32[1]{0}', space=sflag, size = 0x4, scoped, tag = 'scoped memory for simple_dnn_2.1']
    %12 = vsyncpa [#allocation3], 0
    // Predicated region
    $region2: #{simple_dnn_2.1} parent=1 // pred_check
      _
    $region3: #{simple_dnn_2.1} parent=1 // pred_check_branch
      %14 = sbr.rel (0) target = $region5
    $region4: #{simple_dnn_2.1} parent=1 // pred_region
      _
    $region5: #{simple_dnn_2.1} parent=1 // pred_fallthru
      _
    // Predicated region
    $region6: #{simple_dnn_2.1} parent=1 // pred_check
      _
    $region7: #{simple_dnn_2.1} parent=1 // pred_check_branch
      %16 = sbr.rel (0) target = $region9
    $region8: #{simple_dnn_2.1} parent=1 // pred_region
      %s18 = ssub.s32 25088, 25088
      %19 = vsyncadd [#allocation3], %s18
      %s20 = sshll.u32 [#allocation2], 4
      %s21 = int_to_ptr.vmem [resolvable:$true] %s20
      %26 = dma.hbm_to_vmem [thread:$0]  %s1, 25088, %s21, [#allocation3], 256, 256, 16
    $region9: #{simple_dnn_2.1} parent=1 // pred_fallthru
      _
    // Predicated region
    $region10: #{simple_dnn_2.1} parent=1 // pred_check
      _
    $region11: #{simple_dnn_2.1} parent=1 // pred_check_branch
      %28 = sbr.rel (0) target = $region13
    $region12: #{simple_dnn_2.1} parent=1 // pred_region
      _
    $region13: #{simple_dnn_2.1} parent=1 // pred_fallthru
      _
    // Predicated region
    $region14: #{simple_dnn_2.1} parent=1 // pred_check
      _
    $region15: #{simple_dnn_2.1} parent=1 // pred_check_branch
      %30 = sbr.rel (0) target = $region17
    $region16: #{simple_dnn_2.1} parent=1 // pred_region
      _
    $region17: #{simple_dnn_2.1} parent=1 // pred_fallthru
      _
    // Predicated region
    $region18: #{simple_dnn_2.1} parent=1 // pred_check
      _
    $region19: #{simple_dnn_2.1} parent=1 // pred_check_branch
      %32 = sbr.rel (0) target = $region21
    $region20: #{simple_dnn_2.1} parent=1 // pred_region
      _
    $region21: #{simple_dnn_2.1} parent=1 // pred_fallthru
      _
    // Predicated region
    $region22: #{simple_dnn_2.1} parent=1 // pred_check
      _
    $region23: #{simple_dnn_2.1} parent=1 // pred_check_branch
      %34 = sbr.rel (0) target = $region25
    $region24: #{simple_dnn_2.1} parent=1 // pred_region
      _
    $region25: #{simple_dnn_2.1} parent=1 // pred_fallthru
      _
    // Predicated region
    $region26: #{simple_dnn_2.1} parent=1 // pred_check
      _
    $region27: #{simple_dnn_2.1} parent=1 // pred_check_branch
      %36 = sbr.rel (0) target = $region29
    $region28: #{simple_dnn_2.1} parent=1 // pred_region
      _
    $region29: #{simple_dnn_2.1} parent=1 // pred_fallthru
      _
    // Predicated region
    $region30: #{simple_dnn_2.1} parent=1 // pred_check
      _
    $region31: #{simple_dnn_2.1} parent=1 // pred_check_branch
      %38 = sbr.rel (0) target = $region33
    $region32: #{simple_dnn_2.1} parent=1 // pred_region
      %39 = dma.done [#allocation3], 25088
    $region33: #{simple_dnn_2.1} parent=1 // pred_fallthru
      _
    %v41 = vld [vmem:[%s0] sm:$0xff]
    %v42 = vld [vmem:[%s0 + $0x8] sm:$0xff]
    %v43 = vld [vmem:[%s0 + $0x10] sm:$0xff]
    %v44 = vld [vmem:[%s0 + $0x18] sm:$0xff]
    %v45 = vld [vmem:[%s0 + $0x20] sm:$0xff]
    %v46 = vld [vmem:[%s0 + $0x28] sm:$0xff]
    %v47 = vld [vmem:[%s0 + $0x30] sm:$0xff]
    %v48 = vpack.c.bf16 %v41, %v41
    %v49 = vpack.c.bf16 %v42, %v42
    %v50 = vpack.c.bf16 %v43, %v43
    %v51 = vpack.c.bf16 %v44, %v44
    %v52 = vpack.c.bf16 %v45, %v45
    %v53 = vpack.c.bf16 %v46, %v46
    %v54 = vpack.c.bf16 %v47, %v47
    %v55 = vld [vmem:[#allocation2] sm:$0xff]
    %v56 = vld [vmem:[#allocation2 + $0x8] sm:$0xff]
    %v57 = vld [vmem:[#allocation2 + $0x10] sm:$0xff]
    %v58 = vld [vmem:[#allocation2 + $0x18] sm:$0xff]
    %v59 = vld [vmem:[#allocation2 + $0x20] sm:$0xff]
    %v60 = vld [vmem:[#allocation2 + $0x28] sm:$0xff]
    %v61 = vld [vmem:[#allocation2 + $0x30] sm:$0xff]
    %v62 = vld [vmem:[#allocation2 + $0x38] sm:$0xff]
    %v63 = vld [vmem:[#allocation2 + $0x40] sm:$0xff]
    %v64 = vld [vmem:[#allocation2 + $0x48] sm:$0xff]
    %v65 = vld [vmem:[#allocation2 + $0x50] sm:$0xff]
    %v66 = vld [vmem:[#allocation2 + $0x58] sm:$0xff]
    %v67 = vld [vmem:[#allocation2 + $0x60] sm:$0xff]
    %v68 = vld [vmem:[#allocation2 + $0x68] sm:$0xff]
    %v69 = vld [vmem:[#allocation2 + $0x70] sm:$0xff]
    %v70 = vld [vmem:[#allocation2 + $0x78] sm:$0xff]
    %v71 = vld [vmem:[#allocation2 + $0x80] sm:$0xff]
    %v72 = vld [vmem:[#allocation2 + $0x88] sm:$0xff]
    %v73 = vld [vmem:[#allocation2 + $0x90] sm:$0xff]
    %v74 = vld [vmem:[#allocation2 + $0x98] sm:$0xff]
    %v75 = vld [vmem:[#allocation2 + $0xa0] sm:$0xff]
    %v76 = vld [vmem:[#allocation2 + $0xa8] sm:$0xff]
    %v77 = vld [vmem:[#allocation2 + $0xb0] sm:$0xff]
    %v78 = vld [vmem:[#allocation2 + $0xb8] sm:$0xff]
    %v79 = vld [vmem:[#allocation2 + $0xc0] sm:$0xff]
    %v80 = vld [vmem:[#allocation2 + $0xc8] sm:$0xff]
    %v81 = vld [vmem:[#allocation2 + $0xd0] sm:$0xff]
    %v82 = vld [vmem:[#allocation2 + $0xd8] sm:$0xff]
    %v83 = vld [vmem:[#allocation2 + $0xe0] sm:$0xff]
    %v84 = vld [vmem:[#allocation2 + $0xe8] sm:$0xff]
    %v85 = vld [vmem:[#allocation2 + $0xf0] sm:$0xff]
    %v86 = vld [vmem:[#allocation2 + $0xf8] sm:$0xff]
    %v87 = vld [vmem:[#allocation2 + $0x100] sm:$0xff]
    %v88 = vld [vmem:[#allocation2 + $0x108] sm:$0xff]
    %v89 = vld [vmem:[#allocation2 + $0x110] sm:$0xff]
    %v90 = vld [vmem:[#allocation2 + $0x118] sm:$0xff]
    %v91 = vld [vmem:[#allocation2 + $0x120] sm:$0xff]
    %v92 = vld [vmem:[#allocation2 + $0x128] sm:$0xff]
    %v93 = vld [vmem:[#allocation2 + $0x130] sm:$0xff]
    %v94 = vld [vmem:[#allocation2 + $0x138] sm:$0xff]
    %v95 = vld [vmem:[#allocation2 + $0x140] sm:$0xff]
    %v96 = vld [vmem:[#allocation2 + $0x148] sm:$0xff]
    %v97 = vld [vmem:[#allocation2 + $0x150] sm:$0xff]
    %v98 = vld [vmem:[#allocation2 + $0x158] sm:$0xff]
    %v99 = vld [vmem:[#allocation2 + $0x160] sm:$0xff]
    %v100 = vld [vmem:[#allocation2 + $0x168] sm:$0xff]
    %v101 = vld [vmem:[#allocation2 + $0x170] sm:$0xff]
    %v102 = vld [vmem:[#allocation2 + $0x178] sm:$0xff]
    %v103 = vld [vmem:[#allocation2 + $0x180] sm:$0xff]
    %v104 = vld [vmem:[#allocation2 + $0x188] sm:$0xff]
    %v105 = vld [vmem:[#allocation2 + $0x190] sm:$0xff]
    %v106 = vld [vmem:[#allocation2 + $0x198] sm:$0xff]
    %v107 = vld [vmem:[#allocation2 + $0x1a0] sm:$0xff]
    %v108 = vld [vmem:[#allocation2 + $0x1a8] sm:$0xff]
    %v109 = vld [vmem:[#allocation2 + $0x1b0] sm:$0xff]
    %v110 = vld [vmem:[#allocation2 + $0x1b8] sm:$0xff]
    %v111 = vld [vmem:[#allocation2 + $0x1c0] sm:$0xff]
    %v112 = vld [vmem:[#allocation2 + $0x1c8] sm:$0xff]
    %v113 = vld [vmem:[#allocation2 + $0x1d0] sm:$0xff]
    %v114 = vld [vmem:[#allocation2 + $0x1d8] sm:$0xff]
    %v115 = vld [vmem:[#allocation2 + $0x1e0] sm:$0xff]
    %v116 = vld [vmem:[#allocation2 + $0x1e8] sm:$0xff]
    %v117 = vld [vmem:[#allocation2 + $0x1f0] sm:$0xff]
    %v118 = vld [vmem:[#allocation2 + $0x1f8] sm:$0xff]
    %v119 = vld [vmem:[#allocation2 + $0x200] sm:$0xff]
    %v120 = vld [vmem:[#allocation2 + $0x208] sm:$0xff]
    %v121 = vld [vmem:[#allocation2 + $0x210] sm:$0xff]
    %v122 = vld [vmem:[#allocation2 + $0x218] sm:$0xff]
    %v123 = vld [vmem:[#allocation2 + $0x220] sm:$0xff]
    %v124 = vld [vmem:[#allocation2 + $0x228] sm:$0xff]
    %v125 = vld [vmem:[#allocation2 + $0x230] sm:$0xff]
    %v126 = vld [vmem:[#allocation2 + $0x238] sm:$0xff]
    %v127 = vld [vmem:[#allocation2 + $0x240] sm:$0xff]
    %v128 = vld [vmem:[#allocation2 + $0x248] sm:$0xff]
    %v129 = vld [vmem:[#allocation2 + $0x250] sm:$0xff]
    %v130 = vld [vmem:[#allocation2 + $0x258] sm:$0xff]
    %v131 = vld [vmem:[#allocation2 + $0x260] sm:$0xff]
    %v132 = vld [vmem:[#allocation2 + $0x268] sm:$0xff]
    %v133 = vld [vmem:[#allocation2 + $0x270] sm:$0xff]
    %v134 = vld [vmem:[#allocation2 + $0x278] sm:$0xff]
    %v135 = vld [vmem:[#allocation2 + $0x280] sm:$0xff]
    %v136 = vld [vmem:[#allocation2 + $0x288] sm:$0xff]
    %v137 = vld [vmem:[#allocation2 + $0x290] sm:$0xff]
    %v138 = vld [vmem:[#allocation2 + $0x298] sm:$0xff]
    %v139 = vld [vmem:[#allocation2 + $0x2a0] sm:$0xff]
    %v140 = vld [vmem:[#allocation2 + $0x2a8] sm:$0xff]
    %v141 = vld [vmem:[#allocation2 + $0x2b0] sm:$0xff]
    %v142 = vld [vmem:[#allocation2 + $0x2b8] sm:$0xff]
    %v143 = vld [vmem:[#allocation2 + $0x2c0] sm:$0xff]
    %v144 = vld [vmem:[#allocation2 + $0x2c8] sm:$0xff]
    %v145 = vld [vmem:[#allocation2 + $0x2d0] sm:$0xff]
    %v146 = vld [vmem:[#allocation2 + $0x2d8] sm:$0xff]
    %v147 = vld [vmem:[#allocation2 + $0x2e0] sm:$0xff]
    %v148 = vld [vmem:[#allocation2 + $0x2e8] sm:$0xff]
    %v149 = vld [vmem:[#allocation2 + $0x2f0] sm:$0xff]
    %v150 = vld [vmem:[#allocation2 + $0x2f8] sm:$0xff]
    %v151 = vld [vmem:[#allocation2 + $0x300] sm:$0xff]
    %v152 = vld [vmem:[#allocation2 + $0x308] sm:$0xff]
    %v153 = vld [vmem:[#allocation2 + $0x310] sm:$0xff]
    %v154 = vld [vmem:[#allocation2 + $0x318] sm:$0xff]
    %v155 = vld [vmem:[#allocation2 + $0x320] sm:$0xff]
    %v156 = vld [vmem:[#allocation2 + $0x328] sm:$0xff]
    %v157 = vld [vmem:[#allocation2 + $0x330] sm:$0xff]
    %v158 = vld [vmem:[#allocation2 + $0x338] sm:$0xff]
    %v159 = vld [vmem:[#allocation2 + $0x340] sm:$0xff]
    %v160 = vld [vmem:[#allocation2 + $0x348] sm:$0xff]
    %v161 = vld [vmem:[#allocation2 + $0x350] sm:$0xff]
    %v162 = vld [vmem:[#allocation2 + $0x358] sm:$0xff]
    %v163 = vld [vmem:[#allocation2 + $0x360] sm:$0xff]
    %v164 = vld [vmem:[#allocation2 + $0x368] sm:$0xff]
    %v165 = vld [vmem:[#allocation2 + $0x370] sm:$0xff]
    %v166 = vld [vmem:[#allocation2 + $0x378] sm:$0xff]
    %v167 = vld [vmem:[#allocation2 + $0x380] sm:$0xff]
    %v168 = vld [vmem:[#allocation2 + $0x388] sm:$0xff]
    %v169 = vld [vmem:[#allocation2 + $0x390] sm:$0xff]
    %v170 = vld [vmem:[#allocation2 + $0x398] sm:$0xff]
    %v171 = vld [vmem:[#allocation2 + $0x3a0] sm:$0xff]
    %v172 = vld [vmem:[#allocation2 + $0x3a8] sm:$0xff]
    %v173 = vld [vmem:[#allocation2 + $0x3b0] sm:$0xff]
    %v174 = vld [vmem:[#allocation2 + $0x3b8] sm:$0xff]
    %v175 = vld [vmem:[#allocation2 + $0x3c0] sm:$0xff]
    %v176 = vld [vmem:[#allocation2 + $0x3c8] sm:$0xff]
    %v177 = vld [vmem:[#allocation2 + $0x3d0] sm:$0xff]
    %v178 = vld [vmem:[#allocation2 + $0x3d8] sm:$0xff]
    %v179 = vld [vmem:[#allocation2 + $0x3e0] sm:$0xff]
    %v180 = vld [vmem:[#allocation2 + $0x3e8] sm:$0xff]
    %v181 = vld [vmem:[#allocation2 + $0x3f0] sm:$0xff]
    %v182 = vld [vmem:[#allocation2 + $0x3f8] sm:$0xff]
    %v183 = vld [vmem:[#allocation2 + $0x400] sm:$0xff]
    %v184 = vld [vmem:[#allocation2 + $0x408] sm:$0xff]
    %v185 = vld [vmem:[#allocation2 + $0x410] sm:$0xff]
    %v186 = vld [vmem:[#allocation2 + $0x418] sm:$0xff]
    %v187 = vld [vmem:[#allocation2 + $0x420] sm:$0xff]
    %v188 = vld [vmem:[#allocation2 + $0x428] sm:$0xff]
    %v189 = vld [vmem:[#allocation2 + $0x430] sm:$0xff]
    %v190 = vld [vmem:[#allocation2 + $0x438] sm:$0xff]
    %v191 = vld [vmem:[#allocation2 + $0x440] sm:$0xff]
    %v192 = vld [vmem:[#allocation2 + $0x448] sm:$0xff]
    %v193 = vld [vmem:[#allocation2 + $0x450] sm:$0xff]
    %v194 = vld [vmem:[#allocation2 + $0x458] sm:$0xff]
    %v195 = vld [vmem:[#allocation2 + $0x460] sm:$0xff]
    %v196 = vld [vmem:[#allocation2 + $0x468] sm:$0xff]
    %v197 = vld [vmem:[#allocation2 + $0x470] sm:$0xff]
    %v198 = vld [vmem:[#allocation2 + $0x478] sm:$0xff]
    %v199 = vld [vmem:[#allocation2 + $0x480] sm:$0xff]
    %v200 = vld [vmem:[#allocation2 + $0x488] sm:$0xff]
    %v201 = vld [vmem:[#allocation2 + $0x490] sm:$0xff]
    %v202 = vld [vmem:[#allocation2 + $0x498] sm:$0xff]
    %v203 = vld [vmem:[#allocation2 + $0x4a0] sm:$0xff]
    %v204 = vld [vmem:[#allocation2 + $0x4a8] sm:$0xff]
    %v205 = vld [vmem:[#allocation2 + $0x4b0] sm:$0xff]
    %v206 = vld [vmem:[#allocation2 + $0x4b8] sm:$0xff]
    %v207 = vld [vmem:[#allocation2 + $0x4c0] sm:$0xff]
    %v208 = vld [vmem:[#allocation2 + $0x4c8] sm:$0xff]
    %v209 = vld [vmem:[#allocation2 + $0x4d0] sm:$0xff]
    %v210 = vld [vmem:[#allocation2 + $0x4d8] sm:$0xff]
    %v211 = vld [vmem:[#allocation2 + $0x4e0] sm:$0xff]
    %v212 = vld [vmem:[#allocation2 + $0x4e8] sm:$0xff]
    %v213 = vld [vmem:[#allocation2 + $0x4f0] sm:$0xff]
    %v214 = vld [vmem:[#allocation2 + $0x4f8] sm:$0xff]
    %v215 = vld [vmem:[#allocation2 + $0x500] sm:$0xff]
    %v216 = vld [vmem:[#allocation2 + $0x508] sm:$0xff]
    %v217 = vld [vmem:[#allocation2 + $0x510] sm:$0xff]
    %v218 = vld [vmem:[#allocation2 + $0x518] sm:$0xff]
    %v219 = vld [vmem:[#allocation2 + $0x520] sm:$0xff]
    %v220 = vld [vmem:[#allocation2 + $0x528] sm:$0xff]
    %v221 = vld [vmem:[#allocation2 + $0x530] sm:$0xff]
    %v222 = vld [vmem:[#allocation2 + $0x538] sm:$0xff]
    %v223 = vld [vmem:[#allocation2 + $0x540] sm:$0xff]
    %v224 = vld [vmem:[#allocation2 + $0x548] sm:$0xff]
    %v225 = vld [vmem:[#allocation2 + $0x550] sm:$0xff]
    %v226 = vld [vmem:[#allocation2 + $0x558] sm:$0xff]
    %v227 = vld [vmem:[#allocation2 + $0x560] sm:$0xff]
    %v228 = vld [vmem:[#allocation2 + $0x568] sm:$0xff]
    %v229 = vld [vmem:[#allocation2 + $0x570] sm:$0xff]
    %v230 = vld [vmem:[#allocation2 + $0x578] sm:$0xff]
    %v231 = vld [vmem:[#allocation2 + $0x580] sm:$0xff]
    %v232 = vld [vmem:[#allocation2 + $0x588] sm:$0xff]
    %v233 = vld [vmem:[#allocation2 + $0x590] sm:$0xff]
    %v234 = vld [vmem:[#allocation2 + $0x598] sm:$0xff]
    %v235 = vld [vmem:[#allocation2 + $0x5a0] sm:$0xff]
    %v236 = vld [vmem:[#allocation2 + $0x5a8] sm:$0xff]
    %v237 = vld [vmem:[#allocation2 + $0x5b0] sm:$0xff]
    %v238 = vld [vmem:[#allocation2 + $0x5b8] sm:$0xff]
    %v239 = vld [vmem:[#allocation2 + $0x5c0] sm:$0xff]
    %v240 = vld [vmem:[#allocation2 + $0x5c8] sm:$0xff]
    %v241 = vld [vmem:[#allocation2 + $0x5d0] sm:$0xff]
    %v242 = vld [vmem:[#allocation2 + $0x5d8] sm:$0xff]
    %v243 = vld [vmem:[#allocation2 + $0x5e0] sm:$0xff]
    %v244 = vld [vmem:[#allocation2 + $0x5e8] sm:$0xff]
    %v245 = vld [vmem:[#allocation2 + $0x5f0] sm:$0xff]
    %v246 = vld [vmem:[#allocation2 + $0x5f8] sm:$0xff]
    %v247 = vld [vmem:[#allocation2 + $0x600] sm:$0xff]
    %v248 = vld [vmem:[#allocation2 + $0x608] sm:$0xff]
    %v249 = vld [vmem:[#allocation2 + $0x610] sm:$0xff]
    %v250 = vld [vmem:[#allocation2 + $0x618] sm:$0xff]
    %v251 = vld [vmem:[%s2] sm:$0xf]
    %v253 = vlaneseq
    %v254 = vshrl.u32 %v253, 7
    %v255 = vsub.s32 0, %v254
    %v256 = vrot.slane %v251, %v255
    %v257 = vlaneseq
    %v258 = vshrl.u32 %v257, 7
    %v259 = vsub.s32 1, %v258
    %v260 = vrot.slane %v251, %v259
    %v261 = vlaneseq
    %v262 = vshrl.u32 %v261, 7
    %v263 = vsub.s32 2, %v262
    %v264 = vrot.slane %v251, %v263
    %v265 = vlaneseq
    %v266 = vshrl.u32 %v265, 7
    %v267 = vsub.s32 3, %v266
    %v268 = vrot.slane %v251, %v267
    %v469 = vunpack.c.l.b16 %v55
    %v470 = vunpack.c.h.b16 %v55
    %v471 = vunpack.c.l.b16 %v56
    %v472 = vunpack.c.h.b16 %v56
    %v473 = vunpack.c.l.b16 %v57
    %v474 = vunpack.c.h.b16 %v57
    %v475 = vunpack.c.l.b16 %v58
    %v476 = vunpack.c.h.b16 %v58
    %v477 = vunpack.c.l.b16 %v59
    %v478 = vunpack.c.h.b16 %v59
    %v479 = vunpack.c.l.b16 %v60
    %v480 = vunpack.c.h.b16 %v60
    %v481 = vunpack.c.l.b16 %v61
    %v482 = vunpack.c.h.b16 %v61
    %v483 = vunpack.c.l.b16 %v62
    %v484 = vunpack.c.h.b16 %v62
    %v485 = vunpack.c.l.b16 %v63
    %v486 = vunpack.c.h.b16 %v63
    %v487 = vunpack.c.l.b16 %v64
    %v488 = vunpack.c.h.b16 %v64
    %v489 = vunpack.c.l.b16 %v65
    %v490 = vunpack.c.h.b16 %v65
    %v491 = vunpack.c.l.b16 %v66
    %v492 = vunpack.c.h.b16 %v66
    %v493 = vunpack.c.l.b16 %v67
    %v494 = vunpack.c.h.b16 %v67
    %v495 = vunpack.c.l.b16 %v68
    %v496 = vunpack.c.h.b16 %v68
    %v497 = vunpack.c.l.b16 %v69
    %v498 = vunpack.c.h.b16 %v69
    %v499 = vunpack.c.l.b16 %v70
    %v500 = vunpack.c.h.b16 %v70
    %v501 = vunpack.c.l.b16 %v71
    %v502 = vunpack.c.h.b16 %v71
    %v503 = vunpack.c.l.b16 %v72
    %v504 = vunpack.c.h.b16 %v72
    %v505 = vunpack.c.l.b16 %v73
    %v506 = vunpack.c.h.b16 %v73
    %v507 = vunpack.c.l.b16 %v74
    %v508 = vunpack.c.h.b16 %v74
    %v509 = vunpack.c.l.b16 %v75
    %v510 = vunpack.c.h.b16 %v75
    %v511 = vunpack.c.l.b16 %v76
    %v512 = vunpack.c.h.b16 %v76
    %v513 = vunpack.c.l.b16 %v77
    %v514 = vunpack.c.h.b16 %v77
    %v515 = vunpack.c.l.b16 %v78
    %v516 = vunpack.c.h.b16 %v78
    %v517 = vunpack.c.l.b16 %v79
    %v518 = vunpack.c.h.b16 %v79
    %v519 = vunpack.c.l.b16 %v80
    %v520 = vunpack.c.h.b16 %v80
    %v521 = vunpack.c.l.b16 %v81
    %v522 = vunpack.c.h.b16 %v81
    %v523 = vunpack.c.l.b16 %v82
    %v524 = vunpack.c.h.b16 %v82
    %v525 = vunpack.c.l.b16 %v83
    %v526 = vunpack.c.h.b16 %v83
    %v527 = vunpack.c.l.b16 %v84
    %v528 = vunpack.c.h.b16 %v84
    %v529 = vunpack.c.l.b16 %v85
    %v530 = vunpack.c.h.b16 %v85
    %v531 = vunpack.c.l.b16 %v86
    %v532 = vunpack.c.h.b16 %v86
    %v533 = vunpack.c.l.b16 %v87
    %v534 = vunpack.c.h.b16 %v87
    %v535 = vunpack.c.l.b16 %v88
    %v536 = vunpack.c.h.b16 %v88
    %v537 = vunpack.c.l.b16 %v89
    %v538 = vunpack.c.h.b16 %v89
    %v539 = vunpack.c.l.b16 %v90
    %v540 = vunpack.c.h.b16 %v90
    %v541 = vunpack.c.l.b16 %v91
    %v542 = vunpack.c.h.b16 %v91
    %v543 = vunpack.c.l.b16 %v92
    %v544 = vunpack.c.h.b16 %v92
    %v545 = vunpack.c.l.b16 %v93
    %v546 = vunpack.c.h.b16 %v93
    %v547 = vunpack.c.l.b16 %v94
    %v548 = vunpack.c.h.b16 %v94
    %v549 = vunpack.c.l.b16 %v95
    %v550 = vunpack.c.h.b16 %v95
    %v551 = vunpack.c.l.b16 %v96
    %v552 = vunpack.c.h.b16 %v96
    %v553 = vunpack.c.l.b16 %v97
    %v554 = vunpack.c.h.b16 %v97
    %v555 = vunpack.c.l.b16 %v98
    %v556 = vunpack.c.h.b16 %v98
    %v557 = vunpack.c.l.b16 %v99
    %v558 = vunpack.c.h.b16 %v99
    %v559 = vunpack.c.l.b16 %v100
    %v560 = vunpack.c.h.b16 %v100
    %v561 = vunpack.c.l.b16 %v101
    %v562 = vunpack.c.h.b16 %v101
    %v563 = vunpack.c.l.b16 %v102
    %v564 = vunpack.c.h.b16 %v102
    %v565 = vunpack.c.l.b16 %v103
    %v566 = vunpack.c.h.b16 %v103
    %v567 = vunpack.c.l.b16 %v104
    %v568 = vunpack.c.h.b16 %v104
    %v569 = vunpack.c.l.b16 %v105
    %v570 = vunpack.c.h.b16 %v105
    %v571 = vunpack.c.l.b16 %v106
    %v572 = vunpack.c.h.b16 %v106
    %v573 = vunpack.c.l.b16 %v107
    %v574 = vunpack.c.h.b16 %v107
    %v575 = vunpack.c.l.b16 %v108
    %v576 = vunpack.c.h.b16 %v108
    %v577 = vunpack.c.l.b16 %v109
    %v578 = vunpack.c.h.b16 %v109
    %v579 = vunpack.c.l.b16 %v110
    %v580 = vunpack.c.h.b16 %v110
    %v581 = vunpack.c.l.b16 %v111
    %v582 = vunpack.c.h.b16 %v111
    %v583 = vunpack.c.l.b16 %v112
    %v584 = vunpack.c.h.b16 %v112
    %v585 = vunpack.c.l.b16 %v113
    %v586 = vunpack.c.h.b16 %v113
    %v587 = vunpack.c.l.b16 %v114
    %v588 = vunpack.c.h.b16 %v114
    %v589 = vunpack.c.l.b16 %v115
    %v590 = vunpack.c.h.b16 %v115
    %v591 = vunpack.c.l.b16 %v116
    %v592 = vunpack.c.h.b16 %v116
    %v593 = vunpack.c.l.b16 %v117
    %v594 = vunpack.c.h.b16 %v117
    %v595 = vunpack.c.l.b16 %v118
    %v596 = vunpack.c.h.b16 %v118
    %v597 = vunpack.c.l.b16 %v119
    %v598 = vunpack.c.h.b16 %v119
    %v599 = vunpack.c.l.b16 %v120
    %v600 = vunpack.c.h.b16 %v120
    %v601 = vunpack.c.l.b16 %v121
    %v602 = vunpack.c.h.b16 %v121
    %v603 = vunpack.c.l.b16 %v122
    %v604 = vunpack.c.h.b16 %v122
    %v605 = vunpack.c.l.b16 %v123
    %v606 = vunpack.c.h.b16 %v123
    %v607 = vunpack.c.l.b16 %v124
    %v608 = vunpack.c.h.b16 %v124
    %v609 = vunpack.c.l.b16 %v125
    %v610 = vunpack.c.h.b16 %v125
    %v611 = vunpack.c.l.b16 %v126
    %v612 = vunpack.c.h.b16 %v126
    %v613 = vunpack.c.l.b16 %v127
    %v614 = vunpack.c.h.b16 %v127
    %v615 = vunpack.c.l.b16 %v128
    %v616 = vunpack.c.h.b16 %v128
    %v617 = vunpack.c.l.b16 %v129
    %v618 = vunpack.c.h.b16 %v129
    %v619 = vunpack.c.l.b16 %v130
    %v620 = vunpack.c.h.b16 %v130
    %v621 = vunpack.c.l.b16 %v131
    %v622 = vunpack.c.h.b16 %v131
    %v623 = vunpack.c.l.b16 %v132
    %v624 = vunpack.c.h.b16 %v132
    %v625 = vunpack.c.l.b16 %v133
    %v626 = vunpack.c.h.b16 %v133
    %v627 = vunpack.c.l.b16 %v134
    %v628 = vunpack.c.h.b16 %v134
    %v629 = vunpack.c.l.b16 %v135
    %v630 = vunpack.c.h.b16 %v135
    %v631 = vunpack.c.l.b16 %v136
    %v632 = vunpack.c.h.b16 %v136
    %v633 = vunpack.c.l.b16 %v137
    %v634 = vunpack.c.h.b16 %v137
    %v635 = vunpack.c.l.b16 %v138
    %v636 = vunpack.c.h.b16 %v138
    %v637 = vunpack.c.l.b16 %v139
    %v638 = vunpack.c.h.b16 %v139
    %v639 = vunpack.c.l.b16 %v140
    %v640 = vunpack.c.h.b16 %v140
    %v641 = vunpack.c.l.b16 %v141
    %v642 = vunpack.c.h.b16 %v141
    %v643 = vunpack.c.l.b16 %v142
    %v644 = vunpack.c.h.b16 %v142
    %v645 = vunpack.c.l.b16 %v143
    %v646 = vunpack.c.h.b16 %v143
    %v647 = vunpack.c.l.b16 %v144
    %v648 = vunpack.c.h.b16 %v144
    %v649 = vunpack.c.l.b16 %v145
    %v650 = vunpack.c.h.b16 %v145
    %v651 = vunpack.c.l.b16 %v146
    %v652 = vunpack.c.h.b16 %v146
    %v653 = vunpack.c.l.b16 %v147
    %v654 = vunpack.c.h.b16 %v147
    %v655 = vunpack.c.l.b16 %v148
    %v656 = vunpack.c.h.b16 %v148
    %v657 = vunpack.c.l.b16 %v149
    %v658 = vunpack.c.h.b16 %v149
    %v659 = vunpack.c.l.b16 %v150
    %v660 = vunpack.c.h.b16 %v150
    %v661 = vunpack.c.l.b16 %v151
    %v662 = vunpack.c.h.b16 %v151
    %v663 = vunpack.c.l.b16 %v152
    %v664 = vunpack.c.h.b16 %v152
    %v665 = vunpack.c.l.b16 %v153
    %v666 = vunpack.c.h.b16 %v153
    %v667 = vunpack.c.l.b16 %v154
    %v668 = vunpack.c.h.b16 %v154
    %v669 = vunpack.c.l.b16 %v155
    %v670 = vunpack.c.h.b16 %v155
    %v671 = vunpack.c.l.b16 %v156
    %v672 = vunpack.c.h.b16 %v156
    %v673 = vunpack.c.l.b16 %v157
    %v674 = vunpack.c.h.b16 %v157
    %v675 = vunpack.c.l.b16 %v158
    %v676 = vunpack.c.h.b16 %v158
    %v677 = vunpack.c.l.b16 %v159
    %v678 = vunpack.c.h.b16 %v159
    %v679 = vunpack.c.l.b16 %v160
    %v680 = vunpack.c.h.b16 %v160
    %v681 = vunpack.c.l.b16 %v161
    %v682 = vunpack.c.h.b16 %v161
    %v683 = vunpack.c.l.b16 %v162
    %v684 = vunpack.c.h.b16 %v162
    %v685 = vunpack.c.l.b16 %v163
    %v686 = vunpack.c.h.b16 %v163
    %v687 = vunpack.c.l.b16 %v164
    %v688 = vunpack.c.h.b16 %v164
    %v689 = vunpack.c.l.b16 %v165
    %v690 = vunpack.c.h.b16 %v165
    %v691 = vunpack.c.l.b16 %v166
    %v692 = vunpack.c.h.b16 %v166
    %v693 = vunpack.c.l.b16 %v167
    %v694 = vunpack.c.h.b16 %v167
    %v695 = vunpack.c.l.b16 %v168
    %v696 = vunpack.c.h.b16 %v168
    %v697 = vunpack.c.l.b16 %v169
    %v698 = vunpack.c.h.b16 %v169
    %v699 = vunpack.c.l.b16 %v170
    %v700 = vunpack.c.h.b16 %v170
    %v701 = vunpack.c.l.b16 %v171
    %v702 = vunpack.c.h.b16 %v171
    %v703 = vunpack.c.l.b16 %v172
    %v704 = vunpack.c.h.b16 %v172
    %v705 = vunpack.c.l.b16 %v173
    %v706 = vunpack.c.h.b16 %v173
    %v707 = vunpack.c.l.b16 %v174
    %v708 = vunpack.c.h.b16 %v174
    %v709 = vunpack.c.l.b16 %v175
    %v710 = vunpack.c.h.b16 %v175
    %v711 = vunpack.c.l.b16 %v176
    %v712 = vunpack.c.h.b16 %v176
    %v713 = vunpack.c.l.b16 %v177
    %v714 = vunpack.c.h.b16 %v177
    %v715 = vunpack.c.l.b16 %v178
    %v716 = vunpack.c.h.b16 %v178
    %v717 = vunpack.c.l.b16 %v179
    %v718 = vunpack.c.h.b16 %v179
    %v719 = vunpack.c.l.b16 %v180
    %v720 = vunpack.c.h.b16 %v180
    %v721 = vunpack.c.l.b16 %v181
    %v722 = vunpack.c.h.b16 %v181
    %v723 = vunpack.c.l.b16 %v182
    %v724 = vunpack.c.h.b16 %v182
    %v725 = vunpack.c.l.b16 %v183
    %v726 = vunpack.c.h.b16 %v183
    %v727 = vunpack.c.l.b16 %v184
    %v728 = vunpack.c.h.b16 %v184
    %v729 = vunpack.c.l.b16 %v185
    %v730 = vunpack.c.h.b16 %v185
    %v731 = vunpack.c.l.b16 %v186
    %v732 = vunpack.c.h.b16 %v186
    %v733 = vunpack.c.l.b16 %v187
    %v734 = vunpack.c.h.b16 %v187
    %v735 = vunpack.c.l.b16 %v188
    %v736 = vunpack.c.h.b16 %v188
    %v737 = vunpack.c.l.b16 %v189
    %v738 = vunpack.c.h.b16 %v189
    %v739 = vunpack.c.l.b16 %v190
    %v740 = vunpack.c.h.b16 %v190
    %v741 = vunpack.c.l.b16 %v191
    %v742 = vunpack.c.h.b16 %v191
    %v743 = vunpack.c.l.b16 %v192
    %v744 = vunpack.c.h.b16 %v192
    %v745 = vunpack.c.l.b16 %v193
    %v746 = vunpack.c.h.b16 %v193
    %v747 = vunpack.c.l.b16 %v194
    %v748 = vunpack.c.h.b16 %v194
    %v749 = vunpack.c.l.b16 %v195
    %v750 = vunpack.c.h.b16 %v195
    %v751 = vunpack.c.l.b16 %v196
    %v752 = vunpack.c.h.b16 %v196
    %v753 = vunpack.c.l.b16 %v197
    %v754 = vunpack.c.h.b16 %v197
    %v755 = vunpack.c.l.b16 %v198
    %v756 = vunpack.c.h.b16 %v198
    %v757 = vunpack.c.l.b16 %v199
    %v758 = vunpack.c.h.b16 %v199
    %v759 = vunpack.c.l.b16 %v200
    %v760 = vunpack.c.h.b16 %v200
    %v761 = vunpack.c.l.b16 %v201
    %v762 = vunpack.c.h.b16 %v201
    %v763 = vunpack.c.l.b16 %v202
    %v764 = vunpack.c.h.b16 %v202
    %v765 = vunpack.c.l.b16 %v203
    %v766 = vunpack.c.h.b16 %v203
    %v767 = vunpack.c.l.b16 %v204
    %v768 = vunpack.c.h.b16 %v204
    %v769 = vunpack.c.l.b16 %v205
    %v770 = vunpack.c.h.b16 %v205
    %v771 = vunpack.c.l.b16 %v206
    %v772 = vunpack.c.h.b16 %v206
    %v773 = vunpack.c.l.b16 %v207
    %v774 = vunpack.c.h.b16 %v207
    %v775 = vunpack.c.l.b16 %v208
    %v776 = vunpack.c.h.b16 %v208
    %v777 = vunpack.c.l.b16 %v209
    %v778 = vunpack.c.h.b16 %v209
    %v779 = vunpack.c.l.b16 %v210
    %v780 = vunpack.c.h.b16 %v210
    %v781 = vunpack.c.l.b16 %v211
    %v782 = vunpack.c.h.b16 %v211
    %v783 = vunpack.c.l.b16 %v212
    %v784 = vunpack.c.h.b16 %v212
    %v785 = vunpack.c.l.b16 %v213
    %v786 = vunpack.c.h.b16 %v213
    %v787 = vunpack.c.l.b16 %v214
    %v788 = vunpack.c.h.b16 %v214
    %v789 = vunpack.c.l.b16 %v215
    %v790 = vunpack.c.h.b16 %v215
    %v791 = vunpack.c.l.b16 %v216
    %v792 = vunpack.c.h.b16 %v216
    %v793 = vunpack.c.l.b16 %v217
    %v794 = vunpack.c.h.b16 %v217
    %v795 = vunpack.c.l.b16 %v218
    %v796 = vunpack.c.h.b16 %v218
    %v797 = vunpack.c.l.b16 %v219
    %v798 = vunpack.c.h.b16 %v219
    %v799 = vunpack.c.l.b16 %v220
    %v800 = vunpack.c.h.b16 %v220
    %v801 = vunpack.c.l.b16 %v221
    %v802 = vunpack.c.h.b16 %v221
    %v803 = vunpack.c.l.b16 %v222
    %v804 = vunpack.c.h.b16 %v222
    %v805 = vunpack.c.l.b16 %v223
    %v806 = vunpack.c.h.b16 %v223
    %v807 = vunpack.c.l.b16 %v224
    %v808 = vunpack.c.h.b16 %v224
    %v809 = vunpack.c.l.b16 %v225
    %v810 = vunpack.c.h.b16 %v225
    %v811 = vunpack.c.l.b16 %v226
    %v812 = vunpack.c.h.b16 %v226
    %v813 = vunpack.c.l.b16 %v227
    %v814 = vunpack.c.h.b16 %v227
    %v815 = vunpack.c.l.b16 %v228
    %v816 = vunpack.c.h.b16 %v228
    %v817 = vunpack.c.l.b16 %v229
    %v818 = vunpack.c.h.b16 %v229
    %v819 = vunpack.c.l.b16 %v230
    %v820 = vunpack.c.h.b16 %v230
    %v821 = vunpack.c.l.b16 %v231
    %v822 = vunpack.c.h.b16 %v231
    %v823 = vunpack.c.l.b16 %v232
    %v824 = vunpack.c.h.b16 %v232
    %v825 = vunpack.c.l.b16 %v233
    %v826 = vunpack.c.h.b16 %v233
    %v827 = vunpack.c.l.b16 %v234
    %v828 = vunpack.c.h.b16 %v234
    %v829 = vunpack.c.l.b16 %v235
    %v830 = vunpack.c.h.b16 %v235
    %v831 = vunpack.c.l.b16 %v236
    %v832 = vunpack.c.h.b16 %v236
    %v833 = vunpack.c.l.b16 %v237
    %v834 = vunpack.c.h.b16 %v237
    %v835 = vunpack.c.l.b16 %v238
    %v836 = vunpack.c.h.b16 %v238
    %v837 = vunpack.c.l.b16 %v239
    %v838 = vunpack.c.h.b16 %v239
    %v839 = vunpack.c.l.b16 %v240
    %v840 = vunpack.c.h.b16 %v240
    %v841 = vunpack.c.l.b16 %v241
    %v842 = vunpack.c.h.b16 %v241
    %v843 = vunpack.c.l.b16 %v242
    %v844 = vunpack.c.h.b16 %v242
    %v845 = vunpack.c.l.b16 %v243
    %v846 = vunpack.c.h.b16 %v243
    %v847 = vunpack.c.l.b16 %v244
    %v848 = vunpack.c.h.b16 %v244
    %v849 = vunpack.c.l.b16 %v245
    %v850 = vunpack.c.h.b16 %v245
    %v851 = vunpack.c.l.b16 %v246
    %v852 = vunpack.c.h.b16 %v246
    %v853 = vunpack.c.l.b16 %v247
    %v854 = vunpack.c.h.b16 %v247
    %v855 = vunpack.c.l.b16 %v248
    %v856 = vunpack.c.h.b16 %v248
    %v857 = vunpack.c.l.b16 %v249
    %v858 = vunpack.c.h.b16 %v249
    %v859 = vunpack.c.l.b16 %v250
    %v860 = vunpack.c.h.b16 %v250
    %v861 = vpack.c.b16 %v473, %v469
    %v862 = vpack.c.b16 %v474, %v470
    %v863 = vpack.c.b16 %v475, %v471
    %v864 = vpack.c.b16 %v476, %v472
    %v865 = vpack.c.b16 %v481, %v477
    %v866 = vpack.c.b16 %v482, %v478
    %v867 = vpack.c.b16 %v483, %v479
    %v868 = vpack.c.b16 %v484, %v480
    %v869 = vpack.c.b16 %v489, %v485
    %v870 = vpack.c.b16 %v490, %v486
    %v871 = vpack.c.b16 %v491, %v487
    %v872 = vpack.c.b16 %v492, %v488
    %v873 = vpack.c.b16 %v497, %v493
    %v874 = vpack.c.b16 %v498, %v494
    %v875 = vpack.c.b16 %v499, %v495
    %v876 = vpack.c.b16 %v500, %v496
    %v877 = vpack.c.b16 %v505, %v501
    %v878 = vpack.c.b16 %v506, %v502
    %v879 = vpack.c.b16 %v507, %v503
    %v880 = vpack.c.b16 %v508, %v504
    %v881 = vpack.c.b16 %v513, %v509
    %v882 = vpack.c.b16 %v514, %v510
    %v883 = vpack.c.b16 %v515, %v511
    %v884 = vpack.c.b16 %v516, %v512
    %v885 = vpack.c.b16 %v521, %v517
    %v886 = vpack.c.b16 %v522, %v518
    %v887 = vpack.c.b16 %v523, %v519
    %v888 = vpack.c.b16 %v524, %v520
    %v889 = vpack.c.b16 %v529, %v525
    %v890 = vpack.c.b16 %v530, %v526
    %v891 = vpack.c.b16 %v531, %v527
    %v892 = vpack.c.b16 %v532, %v528
    %v893 = vpack.c.b16 %v537, %v533
    %v894 = vpack.c.b16 %v538, %v534
    %v895 = vpack.c.b16 %v539, %v535
    %v896 = vpack.c.b16 %v540, %v536
    %v897 = vpack.c.b16 %v545, %v541
    %v898 = vpack.c.b16 %v546, %v542
    %v899 = vpack.c.b16 %v547, %v543
    %v900 = vpack.c.b16 %v548, %v544
    %v901 = vpack.c.b16 %v553, %v549
    %v902 = vpack.c.b16 %v554, %v550
    %v903 = vpack.c.b16 %v555, %v551
    %v904 = vpack.c.b16 %v556, %v552
    %v905 = vpack.c.b16 %v561, %v557
    %v906 = vpack.c.b16 %v562, %v558
    %v907 = vpack.c.b16 %v563, %v559
    %v908 = vpack.c.b16 %v564, %v560
    %v909 = vpack.c.b16 %v569, %v565
    %v910 = vpack.c.b16 %v570, %v566
    %v911 = vpack.c.b16 %v571, %v567
    %v912 = vpack.c.b16 %v572, %v568
    %v913 = vpack.c.b16 %v577, %v573
    %v914 = vpack.c.b16 %v578, %v574
    %v915 = vpack.c.b16 %v579, %v575
    %v916 = vpack.c.b16 %v580, %v576
    %v917 = vpack.c.b16 %v585, %v581
    %v918 = vpack.c.b16 %v586, %v582
    %v919 = vpack.c.b16 %v587, %v583
    %v920 = vpack.c.b16 %v588, %v584
    %v921 = vpack.c.b16 %v593, %v589
    %v922 = vpack.c.b16 %v594, %v590
    %v923 = vpack.c.b16 %v595, %v591
    %v924 = vpack.c.b16 %v596, %v592
    %v925 = vpack.c.b16 %v601, %v597
    %v926 = vpack.c.b16 %v602, %v598
    %v927 = vpack.c.b16 %v603, %v599
    %v928 = vpack.c.b16 %v604, %v600
    %v929 = vpack.c.b16 %v609, %v605
    %v930 = vpack.c.b16 %v610, %v606
    %v931 = vpack.c.b16 %v611, %v607
    %v932 = vpack.c.b16 %v612, %v608
    %v933 = vpack.c.b16 %v617, %v613
    %v934 = vpack.c.b16 %v618, %v614
    %v935 = vpack.c.b16 %v619, %v615
    %v936 = vpack.c.b16 %v620, %v616
    %v937 = vpack.c.b16 %v625, %v621
    %v938 = vpack.c.b16 %v626, %v622
    %v939 = vpack.c.b16 %v627, %v623
    %v940 = vpack.c.b16 %v628, %v624
    %v941 = vpack.c.b16 %v633, %v629
    %v942 = vpack.c.b16 %v634, %v630
    %v943 = vpack.c.b16 %v635, %v631
    %v944 = vpack.c.b16 %v636, %v632
    %v945 = vpack.c.b16 %v641, %v637
    %v946 = vpack.c.b16 %v642, %v638
    %v947 = vpack.c.b16 %v643, %v639
    %v948 = vpack.c.b16 %v644, %v640
    %v949 = vpack.c.b16 %v649, %v645
    %v950 = vpack.c.b16 %v650, %v646
    %v951 = vpack.c.b16 %v651, %v647
    %v952 = vpack.c.b16 %v652, %v648
    %v953 = vpack.c.b16 %v657, %v653
    %v954 = vpack.c.b16 %v658, %v654
    %v955 = vpack.c.b16 %v659, %v655
    %v956 = vpack.c.b16 %v660, %v656
    %v957 = vpack.c.b16 %v665, %v661
    %v958 = vpack.c.b16 %v666, %v662
    %v959 = vpack.c.b16 %v667, %v663
    %v960 = vpack.c.b16 %v668, %v664
    %v961 = vpack.c.b16 %v673, %v669
    %v962 = vpack.c.b16 %v674, %v670
    %v963 = vpack.c.b16 %v675, %v671
    %v964 = vpack.c.b16 %v676, %v672
    %v965 = vpack.c.b16 %v681, %v677
    %v966 = vpack.c.b16 %v682, %v678
    %v967 = vpack.c.b16 %v683, %v679
    %v968 = vpack.c.b16 %v684, %v680
    %v969 = vpack.c.b16 %v689, %v685
    %v970 = vpack.c.b16 %v690, %v686
    %v971 = vpack.c.b16 %v691, %v687
    %v972 = vpack.c.b16 %v692, %v688
    %v973 = vpack.c.b16 %v697, %v693
    %v974 = vpack.c.b16 %v698, %v694
    %v975 = vpack.c.b16 %v699, %v695
    %v976 = vpack.c.b16 %v700, %v696
    %v977 = vpack.c.b16 %v705, %v701
    %v978 = vpack.c.b16 %v706, %v702
    %v979 = vpack.c.b16 %v707, %v703
    %v980 = vpack.c.b16 %v708, %v704
    %v981 = vpack.c.b16 %v713, %v709
    %v982 = vpack.c.b16 %v714, %v710
    %v983 = vpack.c.b16 %v715, %v711
    %v984 = vpack.c.b16 %v716, %v712
    %v985 = vpack.c.b16 %v721, %v717
    %v986 = vpack.c.b16 %v722, %v718
    %v987 = vpack.c.b16 %v723, %v719
    %v988 = vpack.c.b16 %v724, %v720
    %v989 = vpack.c.b16 %v729, %v725
    %v990 = vpack.c.b16 %v730, %v726
    %v991 = vpack.c.b16 %v731, %v727
    %v992 = vpack.c.b16 %v732, %v728
    %v993 = vpack.c.b16 %v737, %v733
    %v994 = vpack.c.b16 %v738, %v734
    %v995 = vpack.c.b16 %v739, %v735
    %v996 = vpack.c.b16 %v740, %v736
    %v997 = vpack.c.b16 %v745, %v741
    %v998 = vpack.c.b16 %v746, %v742
    %v999 = vpack.c.b16 %v747, %v743
    %v1000 = vpack.c.b16 %v748, %v744
    %v1001 = vpack.c.b16 %v753, %v749
    %v1002 = vpack.c.b16 %v754, %v750
    %v1003 = vpack.c.b16 %v755, %v751
    %v1004 = vpack.c.b16 %v756, %v752
    %v1005 = vpack.c.b16 %v761, %v757
    %v1006 = vpack.c.b16 %v762, %v758
    %v1007 = vpack.c.b16 %v763, %v759
    %v1008 = vpack.c.b16 %v764, %v760
    %v1009 = vpack.c.b16 %v769, %v765
    %v1010 = vpack.c.b16 %v770, %v766
    %v1011 = vpack.c.b16 %v771, %v767
    %v1012 = vpack.c.b16 %v772, %v768
    %v1013 = vpack.c.b16 %v777, %v773
    %v1014 = vpack.c.b16 %v778, %v774
    %v1015 = vpack.c.b16 %v779, %v775
    %v1016 = vpack.c.b16 %v780, %v776
    %v1017 = vpack.c.b16 %v785, %v781
    %v1018 = vpack.c.b16 %v786, %v782
    %v1019 = vpack.c.b16 %v787, %v783
    %v1020 = vpack.c.b16 %v788, %v784
    %v1021 = vpack.c.b16 %v793, %v789
    %v1022 = vpack.c.b16 %v794, %v790
    %v1023 = vpack.c.b16 %v795, %v791
    %v1024 = vpack.c.b16 %v796, %v792
    %v1025 = vpack.c.b16 %v801, %v797
    %v1026 = vpack.c.b16 %v802, %v798
    %v1027 = vpack.c.b16 %v803, %v799
    %v1028 = vpack.c.b16 %v804, %v800
    %v1029 = vpack.c.b16 %v809, %v805
    %v1030 = vpack.c.b16 %v810, %v806
    %v1031 = vpack.c.b16 %v811, %v807
    %v1032 = vpack.c.b16 %v812, %v808
    %v1033 = vpack.c.b16 %v817, %v813
    %v1034 = vpack.c.b16 %v818, %v814
    %v1035 = vpack.c.b16 %v819, %v815
    %v1036 = vpack.c.b16 %v820, %v816
    %v1037 = vpack.c.b16 %v825, %v821
    %v1038 = vpack.c.b16 %v826, %v822
    %v1039 = vpack.c.b16 %v827, %v823
    %v1040 = vpack.c.b16 %v828, %v824
    %v1041 = vpack.c.b16 %v833, %v829
    %v1042 = vpack.c.b16 %v834, %v830
    %v1043 = vpack.c.b16 %v835, %v831
    %v1044 = vpack.c.b16 %v836, %v832
    %v1045 = vpack.c.b16 %v841, %v837
    %v1046 = vpack.c.b16 %v842, %v838
    %v1047 = vpack.c.b16 %v843, %v839
    %v1048 = vpack.c.b16 %v844, %v840
    %v1049 = vpack.c.b16 %v849, %v845
    %v1050 = vpack.c.b16 %v850, %v846
    %v1051 = vpack.c.b16 %v851, %v847
    %v1052 = vpack.c.b16 %v852, %v848
    %v1053 = vpack.c.b16 %v857, %v853
    %v1054 = vpack.c.b16 %v858, %v854
    %v1055 = vpack.c.b16 %v859, %v855
    %v1056 = vpack.c.b16 %v860, %v856
    %vm1253 = vcmask 130048
    %v1255 = vsel %vm1253, %v54, 0
    %1257 = vmatprep.subr.bf16.mxu0 %v862
    %1258 = vmatpush1.bf16.msra.mxu0 %v861
    %1259 = vmatprep.subr.bf16.mxu0 %v866
    %1260 = vmatpush1.bf16.msra.mxu0 %v865
    %1261 = vmatprep.subr.bf16.mxu0 %v870
    %1262 = vmatpush1.bf16.msra.mxu0 %v869
    %1263 = vmatprep.subr.bf16.mxu0 %v874
    %1264 = vmatpush1.bf16.msra.mxu0 %v873
    %1265 = vmatprep.subr.bf16.mxu0 %v878
    %1266 = vmatpush1.bf16.msra.mxu0 %v877
    %1267 = vmatprep.subr.bf16.mxu0 %v882
    %1268 = vmatpush1.bf16.msra.mxu0 %v881
    %1269 = vmatprep.subr.bf16.mxu0 %v886
    %1270 = vmatpush1.bf16.msra.mxu0 %v885
    %1271 = vmatprep.subr.bf16.mxu0 %v890
    %1272 = vmatpush1.bf16.msra.mxu0 %v889
    %1273 = vmatprep.subr.bf16.mxu0 %v894
    %1274 = vmatpush1.bf16.msra.mxu0 %v893
    %1275 = vmatprep.subr.bf16.mxu0 %v898
    %1276 = vmatpush1.bf16.msra.mxu0 %v897
    %1277 = vmatprep.subr.bf16.mxu0 %v902
    %1278 = vmatpush1.bf16.msra.mxu0 %v901
    %1279 = vmatprep.subr.bf16.mxu0 %v906
    %1280 = vmatpush1.bf16.msra.mxu0 %v905
    %1281 = vmatprep.subr.bf16.mxu0 %v910
    %1282 = vmatpush1.bf16.msra.mxu0 %v909
    %1283 = vmatprep.subr.bf16.mxu0 %v914
    %1284 = vmatpush1.bf16.msra.mxu0 %v913
    %1285 = vmatprep.subr.bf16.mxu0 %v918
    %1286 = vmatpush1.bf16.msra.mxu0 %v917
    %1287 = vmatprep.subr.bf16.mxu0 %v922
    %1288 = vmatpush1.bf16.msra.mxu0 %v921
    %1289 = vmatprep.mubr.bf16.mxu0 %v49
    %1290 = vmatmul.mubr.bf16.gmra.mrb[0].mxu0 %v48
    %v1291 = vpop.f32.mrb[0].mxu0
    %v1292 = vadd.f32 %v256, %v1291
    %v1293 = vpop.f32.mrb[0].mxu0
    %v1294 = vadd.f32 %v260, %v1293
    %v1295 = vpop.f32.mrb[0].mxu0
    %v1296 = vpop.f32.mrb[0].mxu0
    %1297 = vdwg.mxu0
    %1298 = vmatprep.subr.bf16.mxu0 %v926
    %1299 = vmatpush1.bf16.msra.mxu0 %v925
    %1300 = vmatprep.subr.bf16.mxu0 %v930
    %1301 = vmatpush1.bf16.msra.mxu0 %v929
    %1302 = vmatprep.subr.bf16.mxu0 %v934
    %1303 = vmatpush1.bf16.msra.mxu0 %v933
    %1304 = vmatprep.subr.bf16.mxu0 %v938
    %1305 = vmatpush1.bf16.msra.mxu0 %v937
    %1306 = vmatprep.subr.bf16.mxu0 %v942
    %1307 = vmatpush1.bf16.msra.mxu0 %v941
    %1308 = vmatprep.subr.bf16.mxu0 %v946
    %1309 = vmatpush1.bf16.msra.mxu0 %v945
    %1310 = vmatprep.subr.bf16.mxu0 %v950
    %1311 = vmatpush1.bf16.msra.mxu0 %v949
    %1312 = vmatprep.subr.bf16.mxu0 %v954
    %1313 = vmatpush1.bf16.msra.mxu0 %v953
    %1314 = vmatprep.subr.bf16.mxu0 %v958
    %1315 = vmatpush1.bf16.msra.mxu0 %v957
    %1316 = vmatprep.subr.bf16.mxu0 %v962
    %1317 = vmatpush1.bf16.msra.mxu0 %v961
    %1318 = vmatprep.subr.bf16.mxu0 %v966
    %1319 = vmatpush1.bf16.msra.mxu0 %v965
    %1320 = vmatprep.subr.bf16.mxu0 %v970
    %1321 = vmatpush1.bf16.msra.mxu0 %v969
    %1322 = vmatprep.subr.bf16.mxu0 %v974
    %1323 = vmatpush1.bf16.msra.mxu0 %v973
    %1324 = vmatprep.subr.bf16.mxu0 %v978
    %1325 = vmatpush1.bf16.msra.mxu0 %v977
    %1326 = vmatprep.subr.bf16.mxu0 %v982
    %1327 = vmatpush1.bf16.msra.mxu0 %v981
    %1328 = vmatprep.subr.bf16.mxu0 %v986
    %1329 = vmatpush1.bf16.msra.mxu0 %v985
    %1330 = vmatprep.mubr.bf16.mxu0 %v51
    %1331 = vmatmul.mubr.bf16.gmra.mrb[0].mxu0 %v50
    %v1332 = vpop.f32.mrb[0].mxu0
    %v1333 = vadd.f32 %v1292, %v1332
    %v1334 = vpop.f32.mrb[0].mxu0
    %v1335 = vadd.f32 %v1294, %v1334
    %v1336 = vpop.f32.mrb[0].mxu0
    %v1337 = vpop.f32.mrb[0].mxu0
    %1338 = vdwg.mxu0
    %1339 = vmatprep.subr.bf16.mxu0 %v990
    %1340 = vmatpush1.bf16.msra.mxu0 %v989
    %1341 = vmatprep.subr.bf16.mxu0 %v994
    %1342 = vmatpush1.bf16.msra.mxu0 %v993
    %1343 = vmatprep.subr.bf16.mxu0 %v998
    %1344 = vmatpush1.bf16.msra.mxu0 %v997
    %1345 = vmatprep.subr.bf16.mxu0 %v1002
    %1346 = vmatpush1.bf16.msra.mxu0 %v1001
    %1347 = vmatprep.subr.bf16.mxu0 %v1006
    %1348 = vmatpush1.bf16.msra.mxu0 %v1005
    %1349 = vmatprep.subr.bf16.mxu0 %v1010
    %1350 = vmatpush1.bf16.msra.mxu0 %v1009
    %1351 = vmatprep.subr.bf16.mxu0 %v1014
    %1352 = vmatpush1.bf16.msra.mxu0 %v1013
    %1353 = vmatprep.subr.bf16.mxu0 %v1018
    %1354 = vmatpush1.bf16.msra.mxu0 %v1017
    %1355 = vmatprep.subr.bf16.mxu0 %v1022
    %1356 = vmatpush1.bf16.msra.mxu0 %v1021
    %1357 = vmatprep.subr.bf16.mxu0 %v1026
    %1358 = vmatpush1.bf16.msra.mxu0 %v1025
    %1359 = vmatprep.subr.bf16.mxu0 %v1030
    %1360 = vmatpush1.bf16.msra.mxu0 %v1029
    %1361 = vmatprep.subr.bf16.mxu0 %v1034
    %1362 = vmatpush1.bf16.msra.mxu0 %v1033
    %1363 = vmatprep.subr.bf16.mxu0 %v1038
    %1364 = vmatpush1.bf16.msra.mxu0 %v1037
    %1365 = vmatprep.subr.bf16.mxu0 %v1042
    %1366 = vmatpush1.bf16.msra.mxu0 %v1041
    %1367 = vmatprep.subr.bf16.mxu0 %v1046
    %1368 = vmatpush1.bf16.msra.mxu0 %v1045
    %1369 = vmatprep.subr.bf16.mxu0 %v1050
    %1370 = vmatpush1.bf16.msra.mxu0 %v1049
    %1371 = vmatprep.mubr.bf16.mxu0 %v53
    %1372 = vmatmul.mubr.bf16.gmra.mrb[0].mxu0 %v52
    %v1373 = vpop.f32.mrb[0].mxu0
    %v1374 = vadd.f32 %v1333, %v1373
    %v1375 = vpop.f32.mrb[0].mxu0
    %v1376 = vadd.f32 %v1335, %v1375
    %v1377 = vpop.f32.mrb[0].mxu0
    %v1378 = vpop.f32.mrb[0].mxu0
    %1379 = vdwg.mxu0
    %1380 = vmatprep.subr.bf16.mxu0 %v1054
    %1381 = vmatpush1.bf16.msra.mxu0 %v1053
    %1382 = vmatprep.subr.bf16.mxu0 0
    %1383 = vmatpush1.bf16.msra.mxu0 0
    %1384 = vmatprep.subr.bf16.mxu0 0
    %1385 = vmatpush1.bf16.msra.mxu0 0
    %1386 = vmatprep.subr.bf16.mxu0 0
    %1387 = vmatpush1.bf16.msra.mxu0 0
    %1388 = vmatprep.subr.bf16.mxu0 0
    %1389 = vmatpush1.bf16.msra.mxu0 0
    %1390 = vmatprep.subr.bf16.mxu0 0
    %1391 = vmatpush1.bf16.msra.mxu0 0
    %1392 = vmatprep.subr.bf16.mxu0 0
    %1393 = vmatpush1.bf16.msra.mxu0 0
    %1394 = vmatprep.subr.bf16.mxu0 0
    %1395 = vmatpush1.bf16.msra.mxu0 0
    %1396 = vmatprep.subr.bf16.mxu0 0
    %1397 = vmatpush1.bf16.msra.mxu0 0
    %1398 = vmatprep.subr.bf16.mxu0 0
    %1399 = vmatpush1.bf16.msra.mxu0 0
    %1400 = vmatprep.subr.bf16.mxu0 0
    %1401 = vmatpush1.bf16.msra.mxu0 0
    %1402 = vmatprep.subr.bf16.mxu0 0
    %1403 = vmatpush1.bf16.msra.mxu0 0
    %1404 = vmatprep.subr.bf16.mxu0 0
    %1405 = vmatpush1.bf16.msra.mxu0 0
    %1406 = vmatprep.subr.bf16.mxu0 0
    %1407 = vmatpush1.bf16.msra.mxu0 0
    %1408 = vmatprep.subr.bf16.mxu0 0
    %1409 = vmatpush1.bf16.msra.mxu0 0
    %1410 = vmatprep.subr.bf16.mxu0 0
    %1411 = vmatpush1.bf16.msra.mxu0 0
    %1412 = vmatprep.mubr.bf16.mxu0 0
    %1413 = vmatmul.mubr.bf16.gmra.mrb[0].mxu0 %v1255
    %v1414 = vpop.f32.mrb[0].mxu0
    %v1415 = vadd.f32 %v1374, %v1414
    %v1416 = vpop.f32.mrb[0].mxu0
    %v1417 = vadd.f32 %v1376, %v1416
    %v1418 = vpop.f32.mrb[0].mxu0
    %v1419 = vpop.f32.mrb[0].mxu0
    %1420 = vdwg.mxu0
    %1421 = vmatprep.subr.bf16.mxu0 %v864
    %1422 = vmatpush1.bf16.msra.mxu0 %v863
    %1423 = vmatprep.subr.bf16.mxu0 %v868
    %1424 = vmatpush1.bf16.msra.mxu0 %v867
    %1425 = vmatprep.subr.bf16.mxu0 %v872
    %1426 = vmatpush1.bf16.msra.mxu0 %v871
    %1427 = vmatprep.subr.bf16.mxu0 %v876
    %1428 = vmatpush1.bf16.msra.mxu0 %v875
    %1429 = vmatprep.subr.bf16.mxu0 %v880
    %1430 = vmatpush1.bf16.msra.mxu0 %v879
    %1431 = vmatprep.subr.bf16.mxu0 %v884
    %1432 = vmatpush1.bf16.msra.mxu0 %v883
    %1433 = vmatprep.subr.bf16.mxu0 %v888
    %1434 = vmatpush1.bf16.msra.mxu0 %v887
    %1435 = vmatprep.subr.bf16.mxu0 %v892
    %1436 = vmatpush1.bf16.msra.mxu0 %v891
    %1437 = vmatprep.subr.bf16.mxu0 %v896
    %1438 = vmatpush1.bf16.msra.mxu0 %v895
    %1439 = vmatprep.subr.bf16.mxu0 %v900
    %1440 = vmatpush1.bf16.msra.mxu0 %v899
    %1441 = vmatprep.subr.bf16.mxu0 %v904
    %1442 = vmatpush1.bf16.msra.mxu0 %v903
    %1443 = vmatprep.subr.bf16.mxu0 %v908
    %1444 = vmatpush1.bf16.msra.mxu0 %v907
    %1445 = vmatprep.subr.bf16.mxu0 %v912
    %1446 = vmatpush1.bf16.msra.mxu0 %v911
    %1447 = vmatprep.subr.bf16.mxu0 %v916
    %1448 = vmatpush1.bf16.msra.mxu0 %v915
    %1449 = vmatprep.subr.bf16.mxu0 %v920
    %1450 = vmatpush1.bf16.msra.mxu0 %v919
    %1451 = vmatprep.subr.bf16.mxu0 %v924
    %1452 = vmatpush1.bf16.msra.mxu0 %v923
    %1453 = vmatprep.mubr.bf16.mxu0 %v49
    %1454 = vmatmul.mubr.bf16.gmra.mrb[0].mxu0 %v48
    %v1455 = vpop.f32.mrb[0].mxu0
    %v1456 = vadd.f32 %v264, %v1455
    %v1457 = vpop.f32.mrb[0].mxu0
    %v1458 = vadd.f32 %v268, %v1457
    %v1459 = vpop.f32.mrb[0].mxu0
    %v1460 = vpop.f32.mrb[0].mxu0
    %1461 = vdwg.mxu0
    %1462 = vmatprep.subr.bf16.mxu0 %v928
    %1463 = vmatpush1.bf16.msra.mxu0 %v927
    %1464 = vmatprep.subr.bf16.mxu0 %v932
    %1465 = vmatpush1.bf16.msra.mxu0 %v931
    %1466 = vmatprep.subr.bf16.mxu0 %v936
    %1467 = vmatpush1.bf16.msra.mxu0 %v935
    %1468 = vmatprep.subr.bf16.mxu0 %v940
    %1469 = vmatpush1.bf16.msra.mxu0 %v939
    %1470 = vmatprep.subr.bf16.mxu0 %v944
    %1471 = vmatpush1.bf16.msra.mxu0 %v943
    %1472 = vmatprep.subr.bf16.mxu0 %v948
    %1473 = vmatpush1.bf16.msra.mxu0 %v947
    %1474 = vmatprep.subr.bf16.mxu0 %v952
    %1475 = vmatpush1.bf16.msra.mxu0 %v951
    %1476 = vmatprep.subr.bf16.mxu0 %v956
    %1477 = vmatpush1.bf16.msra.mxu0 %v955
    %1478 = vmatprep.subr.bf16.mxu0 %v960
    %1479 = vmatpush1.bf16.msra.mxu0 %v959
    %1480 = vmatprep.subr.bf16.mxu0 %v964
    %1481 = vmatpush1.bf16.msra.mxu0 %v963
    %1482 = vmatprep.subr.bf16.mxu0 %v968
    %1483 = vmatpush1.bf16.msra.mxu0 %v967
    %1484 = vmatprep.subr.bf16.mxu0 %v972
    %1485 = vmatpush1.bf16.msra.mxu0 %v971
    %1486 = vmatprep.subr.bf16.mxu0 %v976
    %1487 = vmatpush1.bf16.msra.mxu0 %v975
    %1488 = vmatprep.subr.bf16.mxu0 %v980
    %1489 = vmatpush1.bf16.msra.mxu0 %v979
    %1490 = vmatprep.subr.bf16.mxu0 %v984
    %1491 = vmatpush1.bf16.msra.mxu0 %v983
    %1492 = vmatprep.subr.bf16.mxu0 %v988
    %1493 = vmatpush1.bf16.msra.mxu0 %v987
    %1494 = vmatprep.mubr.bf16.mxu0 %v51
    %1495 = vmatmul.mubr.bf16.gmra.mrb[0].mxu0 %v50
    %v1496 = vpop.f32.mrb[0].mxu0
    %v1497 = vadd.f32 %v1456, %v1496
    %v1498 = vpop.f32.mrb[0].mxu0
    %v1499 = vadd.f32 %v1458, %v1498
    %v1500 = vpop.f32.mrb[0].mxu0
    %v1501 = vpop.f32.mrb[0].mxu0
    %1502 = vdwg.mxu0
    %1503 = vmatprep.subr.bf16.mxu0 %v992
    %1504 = vmatpush1.bf16.msra.mxu0 %v991
    %1505 = vmatprep.subr.bf16.mxu0 %v996
    %1506 = vmatpush1.bf16.msra.mxu0 %v995
    %1507 = vmatprep.subr.bf16.mxu0 %v1000
    %1508 = vmatpush1.bf16.msra.mxu0 %v999
    %1509 = vmatprep.subr.bf16.mxu0 %v1004
    %1510 = vmatpush1.bf16.msra.mxu0 %v1003
    %1511 = vmatprep.subr.bf16.mxu0 %v1008
    %1512 = vmatpush1.bf16.msra.mxu0 %v1007
    %1513 = vmatprep.subr.bf16.mxu0 %v1012
    %1514 = vmatpush1.bf16.msra.mxu0 %v1011
    %1515 = vmatprep.subr.bf16.mxu0 %v1016
    %1516 = vmatpush1.bf16.msra.mxu0 %v1015
    %1517 = vmatprep.subr.bf16.mxu0 %v1020
    %1518 = vmatpush1.bf16.msra.mxu0 %v1019
    %1519 = vmatprep.subr.bf16.mxu0 %v1024
    %1520 = vmatpush1.bf16.msra.mxu0 %v1023
    %1521 = vmatprep.subr.bf16.mxu0 %v1028
    %1522 = vmatpush1.bf16.msra.mxu0 %v1027
    %1523 = vmatprep.subr.bf16.mxu0 %v1032
    %1524 = vmatpush1.bf16.msra.mxu0 %v1031
    %1525 = vmatprep.subr.bf16.mxu0 %v1036
    %1526 = vmatpush1.bf16.msra.mxu0 %v1035
    %1527 = vmatprep.subr.bf16.mxu0 %v1040
    %1528 = vmatpush1.bf16.msra.mxu0 %v1039
    %1529 = vmatprep.subr.bf16.mxu0 %v1044
    %1530 = vmatpush1.bf16.msra.mxu0 %v1043
    %1531 = vmatprep.subr.bf16.mxu0 %v1048
    %1532 = vmatpush1.bf16.msra.mxu0 %v1047
    %1533 = vmatprep.subr.bf16.mxu0 %v1052
    %1534 = vmatpush1.bf16.msra.mxu0 %v1051
    %1535 = vmatprep.mubr.bf16.mxu0 %v53
    %1536 = vmatmul.mubr.bf16.gmra.mrb[0].mxu0 %v52
    %v1537 = vpop.f32.mrb[0].mxu0
    %v1538 = vadd.f32 %v1497, %v1537
    %v1539 = vpop.f32.mrb[0].mxu0
    %v1540 = vadd.f32 %v1499, %v1539
    %v1541 = vpop.f32.mrb[0].mxu0
    %v1542 = vpop.f32.mrb[0].mxu0
    %1543 = vdwg.mxu0
    %1544 = vmatprep.subr.bf16.mxu0 %v1056
    %1545 = vmatpush1.bf16.msra.mxu0 %v1055
    %1546 = vmatprep.subr.bf16.mxu0 0
    %1547 = vmatpush1.bf16.msra.mxu0 0
    %1548 = vmatprep.subr.bf16.mxu0 0
    %1549 = vmatpush1.bf16.msra.mxu0 0
    %1550 = vmatprep.subr.bf16.mxu0 0
    %1551 = vmatpush1.bf16.msra.mxu0 0
    %1552 = vmatprep.subr.bf16.mxu0 0
    %1553 = vmatpush1.bf16.msra.mxu0 0
    %1554 = vmatprep.subr.bf16.mxu0 0
    %1555 = vmatpush1.bf16.msra.mxu0 0
    %1556 = vmatprep.subr.bf16.mxu0 0
    %1557 = vmatpush1.bf16.msra.mxu0 0
    %1558 = vmatprep.subr.bf16.mxu0 0
    %1559 = vmatpush1.bf16.msra.mxu0 0
    %1560 = vmatprep.subr.bf16.mxu0 0
    %1561 = vmatpush1.bf16.msra.mxu0 0
    %1562 = vmatprep.subr.bf16.mxu0 0
    %1563 = vmatpush1.bf16.msra.mxu0 0
    %1564 = vmatprep.subr.bf16.mxu0 0
    %1565 = vmatpush1.bf16.msra.mxu0 0
    %1566 = vmatprep.subr.bf16.mxu0 0
    %1567 = vmatpush1.bf16.msra.mxu0 0
    %1568 = vmatprep.subr.bf16.mxu0 0
    %1569 = vmatpush1.bf16.msra.mxu0 0
    %1570 = vmatprep.subr.bf16.mxu0 0
    %1571 = vmatpush1.bf16.msra.mxu0 0
    %1572 = vmatprep.subr.bf16.mxu0 0
    %1573 = vmatpush1.bf16.msra.mxu0 0
    %1574 = vmatprep.subr.bf16.mxu0 0
    %1575 = vmatpush1.bf16.msra.mxu0 0
    %1576 = vmatprep.mubr.bf16.mxu0 0
    %1577 = vmatmul.mubr.bf16.gmra.mrb[0].mxu0 %v1255
    %v1578 = vpop.f32.mrb[0].mxu0
    %v1579 = vadd.f32 %v1538, %v1578
    %v1580 = vpop.f32.mrb[0].mxu0
    %v1581 = vadd.f32 %v1540, %v1580
    %v1582 = vpop.f32.mrb[0].mxu0
    %v1583 = vpop.f32.mrb[0].mxu0
    %1584 = vdwg.mxu0
    %v1585 = vmax.f32 %v1415, 0.0
    %v1586 = vmax.f32 %v1417, 0.0
    %v1587 = vmax.f32 %v1579, 0.0
    %v1588 = vmax.f32 %v1581, 0.0
    %v1589 = vpack.c.bf16 %v1585, %v1585
    %v1590 = vpack.c.bf16 %v1586, %v1586
    %v1591 = vpack.c.bf16 %v1587, %v1587
    %v1592 = vpack.c.bf16 %v1588, %v1588
    %v1593 = vld [vmem:[%s3] sm:$0xff]
    %v1594 = vld [vmem:[%s3 + $0x8] sm:$0xff]
    %v1595 = vld [vmem:[%s3 + $0x10] sm:$0xff]
    %v1596 = vld [vmem:[%s3 + $0x18] sm:$0xff]
    %v1597 = vld [vmem:[%s3 + $0x20] sm:$0xff]
    %v1598 = vld [vmem:[%s3 + $0x28] sm:$0xff]
    %v1599 = vld [vmem:[%s3 + $0x30] sm:$0xff]
    %v1600 = vld [vmem:[%s3 + $0x38] sm:$0xff]
    %v1601 = vld [vmem:[%s3 + $0x40] sm:$0xff]
    %v1602 = vld [vmem:[%s3 + $0x48] sm:$0xff]
    %v1603 = vld [vmem:[%s3 + $0x50] sm:$0xff]
    %v1604 = vld [vmem:[%s3 + $0x58] sm:$0xff]
    %v1605 = vld [vmem:[%s3 + $0x60] sm:$0xff]
    %v1606 = vld [vmem:[%s3 + $0x68] sm:$0xff]
    %v1607 = vld [vmem:[%s3 + $0x70] sm:$0xff]
    %v1608 = vld [vmem:[%s3 + $0x78] sm:$0xff]
    %v1609 = vld [vmem:[%s3 + $0x80] sm:$0xff]
    %v1610 = vld [vmem:[%s3 + $0x88] sm:$0xff]
    %v1611 = vld [vmem:[%s3 + $0x90] sm:$0xff]
    %v1612 = vld [vmem:[%s3 + $0x98] sm:$0xff]
    %v1613 = vld [vmem:[%s3 + $0xa0] sm:$0xff]
    %v1614 = vld [vmem:[%s3 + $0xa8] sm:$0xff]
    %v1615 = vld [vmem:[%s3 + $0xb0] sm:$0xff]
    %v1616 = vld [vmem:[%s3 + $0xb8] sm:$0xff]
    %v1617 = vld [vmem:[%s3 + $0xc0] sm:$0xff]
    %v1618 = vld [vmem:[%s3 + $0xc8] sm:$0xff]
    %v1619 = vld [vmem:[%s3 + $0xd0] sm:$0xff]
    %v1620 = vld [vmem:[%s3 + $0xd8] sm:$0xff]
    %v1621 = vld [vmem:[%s3 + $0xe0] sm:$0xff]
    %v1622 = vld [vmem:[%s3 + $0xe8] sm:$0xff]
    %v1623 = vld [vmem:[%s3 + $0xf0] sm:$0xff]
    %v1624 = vld [vmem:[%s3 + $0xf8] sm:$0xff]
    %v1625 = vld [vmem:[%s3 + $0x100] sm:$0xff]
    %v1626 = vld [vmem:[%s3 + $0x108] sm:$0xff]
    %v1627 = vld [vmem:[%s3 + $0x110] sm:$0xff]
    %v1628 = vld [vmem:[%s3 + $0x118] sm:$0xff]
    %v1629 = vld [vmem:[%s3 + $0x120] sm:$0xff]
    %v1630 = vld [vmem:[%s3 + $0x128] sm:$0xff]
    %v1631 = vld [vmem:[%s3 + $0x130] sm:$0xff]
    %v1632 = vld [vmem:[%s3 + $0x138] sm:$0xff]
    %v1633 = vld [vmem:[%s3 + $0x140] sm:$0xff]
    %v1634 = vld [vmem:[%s3 + $0x148] sm:$0xff]
    %v1635 = vld [vmem:[%s3 + $0x150] sm:$0xff]
    %v1636 = vld [vmem:[%s3 + $0x158] sm:$0xff]
    %v1637 = vld [vmem:[%s3 + $0x160] sm:$0xff]
    %v1638 = vld [vmem:[%s3 + $0x168] sm:$0xff]
    %v1639 = vld [vmem:[%s3 + $0x170] sm:$0xff]
    %v1640 = vld [vmem:[%s3 + $0x178] sm:$0xff]
    %v1641 = vld [vmem:[%s3 + $0x180] sm:$0xff]
    %v1642 = vld [vmem:[%s3 + $0x188] sm:$0xff]
    %v1643 = vld [vmem:[%s3 + $0x190] sm:$0xff]
    %v1644 = vld [vmem:[%s3 + $0x198] sm:$0xff]
    %v1645 = vld [vmem:[%s3 + $0x1a0] sm:$0xff]
    %v1646 = vld [vmem:[%s3 + $0x1a8] sm:$0xff]
    %v1647 = vld [vmem:[%s3 + $0x1b0] sm:$0xff]
    %v1648 = vld [vmem:[%s3 + $0x1b8] sm:$0xff]
    %v1649 = vld [vmem:[%s3 + $0x1c0] sm:$0xff]
    %v1650 = vld [vmem:[%s3 + $0x1c8] sm:$0xff]
    %v1651 = vld [vmem:[%s3 + $0x1d0] sm:$0xff]
    %v1652 = vld [vmem:[%s3 + $0x1d8] sm:$0xff]
    %v1653 = vld [vmem:[%s3 + $0x1e0] sm:$0xff]
    %v1654 = vld [vmem:[%s3 + $0x1e8] sm:$0xff]
    %v1655 = vld [vmem:[%s3 + $0x1f0] sm:$0xff]
    %v1656 = vld [vmem:[%s3 + $0x1f8] sm:$0xff]
    %v1657 = vld [vmem:[%s4] sm:$0x3]
    %v1659 = vlaneseq
    %v1660 = vshrl.u32 %v1659, 7
    %v1661 = vsub.s32 0, %v1660
    %v1662 = vrot.slane %v1657, %v1661
    %v1663 = vlaneseq
    %v1664 = vshrl.u32 %v1663, 7
    %v1665 = vsub.s32 1, %v1664
    %v1666 = vrot.slane %v1657, %v1665
    %v1733 = vunpack.c.l.b16 %v1593
    %v1734 = vunpack.c.h.b16 %v1593
    %v1735 = vunpack.c.l.b16 %v1594
    %v1736 = vunpack.c.h.b16 %v1594
    %v1737 = vunpack.c.l.b16 %v1595
    %v1738 = vunpack.c.h.b16 %v1595
    %v1739 = vunpack.c.l.b16 %v1596
    %v1740 = vunpack.c.h.b16 %v1596
    %v1741 = vunpack.c.l.b16 %v1597
    %v1742 = vunpack.c.h.b16 %v1597
    %v1743 = vunpack.c.l.b16 %v1598
    %v1744 = vunpack.c.h.b16 %v1598
    %v1745 = vunpack.c.l.b16 %v1599
    %v1746 = vunpack.c.h.b16 %v1599
    %v1747 = vunpack.c.l.b16 %v1600
    %v1748 = vunpack.c.h.b16 %v1600
    %v1749 = vunpack.c.l.b16 %v1601
    %v1750 = vunpack.c.h.b16 %v1601
    %v1751 = vunpack.c.l.b16 %v1602
    %v1752 = vunpack.c.h.b16 %v1602
    %v1753 = vunpack.c.l.b16 %v1603
    %v1754 = vunpack.c.h.b16 %v1603
    %v1755 = vunpack.c.l.b16 %v1604
    %v1756 = vunpack.c.h.b16 %v1604
    %v1757 = vunpack.c.l.b16 %v1605
    %v1758 = vunpack.c.h.b16 %v1605
    %v1759 = vunpack.c.l.b16 %v1606
    %v1760 = vunpack.c.h.b16 %v1606
    %v1761 = vunpack.c.l.b16 %v1607
    %v1762 = vunpack.c.h.b16 %v1607
    %v1763 = vunpack.c.l.b16 %v1608
    %v1764 = vunpack.c.h.b16 %v1608
    %v1765 = vunpack.c.l.b16 %v1609
    %v1766 = vunpack.c.h.b16 %v1609
    %v1767 = vunpack.c.l.b16 %v1610
    %v1768 = vunpack.c.h.b16 %v1610
    %v1769 = vunpack.c.l.b16 %v1611
    %v1770 = vunpack.c.h.b16 %v1611
    %v1771 = vunpack.c.l.b16 %v1612
    %v1772 = vunpack.c.h.b16 %v1612
    %v1773 = vunpack.c.l.b16 %v1613
    %v1774 = vunpack.c.h.b16 %v1613
    %v1775 = vunpack.c.l.b16 %v1614
    %v1776 = vunpack.c.h.b16 %v1614
    %v1777 = vunpack.c.l.b16 %v1615
    %v1778 = vunpack.c.h.b16 %v1615
    %v1779 = vunpack.c.l.b16 %v1616
    %v1780 = vunpack.c.h.b16 %v1616
    %v1781 = vunpack.c.l.b16 %v1617
    %v1782 = vunpack.c.h.b16 %v1617
    %v1783 = vunpack.c.l.b16 %v1618
    %v1784 = vunpack.c.h.b16 %v1618
    %v1785 = vunpack.c.l.b16 %v1619
    %v1786 = vunpack.c.h.b16 %v1619
    %v1787 = vunpack.c.l.b16 %v1620
    %v1788 = vunpack.c.h.b16 %v1620
    %v1789 = vunpack.c.l.b16 %v1621
    %v1790 = vunpack.c.h.b16 %v1621
    %v1791 = vunpack.c.l.b16 %v1622
    %v1792 = vunpack.c.h.b16 %v1622
    %v1793 = vunpack.c.l.b16 %v1623
    %v1794 = vunpack.c.h.b16 %v1623
    %v1795 = vunpack.c.l.b16 %v1624
    %v1796 = vunpack.c.h.b16 %v1624
    %v1797 = vunpack.c.l.b16 %v1625
    %v1798 = vunpack.c.h.b16 %v1625
    %v1799 = vunpack.c.l.b16 %v1626
    %v1800 = vunpack.c.h.b16 %v1626
    %v1801 = vunpack.c.l.b16 %v1627
    %v1802 = vunpack.c.h.b16 %v1627
    %v1803 = vunpack.c.l.b16 %v1628
    %v1804 = vunpack.c.h.b16 %v1628
    %v1805 = vunpack.c.l.b16 %v1629
    %v1806 = vunpack.c.h.b16 %v1629
    %v1807 = vunpack.c.l.b16 %v1630
    %v1808 = vunpack.c.h.b16 %v1630
    %v1809 = vunpack.c.l.b16 %v1631
    %v1810 = vunpack.c.h.b16 %v1631
    %v1811 = vunpack.c.l.b16 %v1632
    %v1812 = vunpack.c.h.b16 %v1632
    %v1813 = vunpack.c.l.b16 %v1633
    %v1814 = vunpack.c.h.b16 %v1633
    %v1815 = vunpack.c.l.b16 %v1634
    %v1816 = vunpack.c.h.b16 %v1634
    %v1817 = vunpack.c.l.b16 %v1635
    %v1818 = vunpack.c.h.b16 %v1635
    %v1819 = vunpack.c.l.b16 %v1636
    %v1820 = vunpack.c.h.b16 %v1636
    %v1821 = vunpack.c.l.b16 %v1637
    %v1822 = vunpack.c.h.b16 %v1637
    %v1823 = vunpack.c.l.b16 %v1638
    %v1824 = vunpack.c.h.b16 %v1638
    %v1825 = vunpack.c.l.b16 %v1639
    %v1826 = vunpack.c.h.b16 %v1639
    %v1827 = vunpack.c.l.b16 %v1640
    %v1828 = vunpack.c.h.b16 %v1640
    %v1829 = vunpack.c.l.b16 %v1641
    %v1830 = vunpack.c.h.b16 %v1641
    %v1831 = vunpack.c.l.b16 %v1642
    %v1832 = vunpack.c.h.b16 %v1642
    %v1833 = vunpack.c.l.b16 %v1643
    %v1834 = vunpack.c.h.b16 %v1643
    %v1835 = vunpack.c.l.b16 %v1644
    %v1836 = vunpack.c.h.b16 %v1644
    %v1837 = vunpack.c.l.b16 %v1645
    %v1838 = vunpack.c.h.b16 %v1645
    %v1839 = vunpack.c.l.b16 %v1646
    %v1840 = vunpack.c.h.b16 %v1646
    %v1841 = vunpack.c.l.b16 %v1647
    %v1842 = vunpack.c.h.b16 %v1647
    %v1843 = vunpack.c.l.b16 %v1648
    %v1844 = vunpack.c.h.b16 %v1648
    %v1845 = vunpack.c.l.b16 %v1649
    %v1846 = vunpack.c.h.b16 %v1649
    %v1847 = vunpack.c.l.b16 %v1650
    %v1848 = vunpack.c.h.b16 %v1650
    %v1849 = vunpack.c.l.b16 %v1651
    %v1850 = vunpack.c.h.b16 %v1651
    %v1851 = vunpack.c.l.b16 %v1652
    %v1852 = vunpack.c.h.b16 %v1652
    %v1853 = vunpack.c.l.b16 %v1653
    %v1854 = vunpack.c.h.b16 %v1653
    %v1855 = vunpack.c.l.b16 %v1654
    %v1856 = vunpack.c.h.b16 %v1654
    %v1857 = vunpack.c.l.b16 %v1655
    %v1858 = vunpack.c.h.b16 %v1655
    %v1859 = vunpack.c.l.b16 %v1656
    %v1860 = vunpack.c.h.b16 %v1656
    %v1861 = vpack.c.b16 %v1735, %v1733
    %v1862 = vpack.c.b16 %v1736, %v1734
    %v1863 = vpack.c.b16 %v1739, %v1737
    %v1864 = vpack.c.b16 %v1740, %v1738
    %v1865 = vpack.c.b16 %v1743, %v1741
    %v1866 = vpack.c.b16 %v1744, %v1742
    %v1867 = vpack.c.b16 %v1747, %v1745
    %v1868 = vpack.c.b16 %v1748, %v1746
    %v1869 = vpack.c.b16 %v1751, %v1749
    %v1870 = vpack.c.b16 %v1752, %v1750
    %v1871 = vpack.c.b16 %v1755, %v1753
    %v1872 = vpack.c.b16 %v1756, %v1754
    %v1873 = vpack.c.b16 %v1759, %v1757
    %v1874 = vpack.c.b16 %v1760, %v1758
    %v1875 = vpack.c.b16 %v1763, %v1761
    %v1876 = vpack.c.b16 %v1764, %v1762
    %v1877 = vpack.c.b16 %v1767, %v1765
    %v1878 = vpack.c.b16 %v1768, %v1766
    %v1879 = vpack.c.b16 %v1771, %v1769
    %v1880 = vpack.c.b16 %v1772, %v1770
    %v1881 = vpack.c.b16 %v1775, %v1773
    %v1882 = vpack.c.b16 %v1776, %v1774
    %v1883 = vpack.c.b16 %v1779, %v1777
    %v1884 = vpack.c.b16 %v1780, %v1778
    %v1885 = vpack.c.b16 %v1783, %v1781
    %v1886 = vpack.c.b16 %v1784, %v1782
    %v1887 = vpack.c.b16 %v1787, %v1785
    %v1888 = vpack.c.b16 %v1788, %v1786
    %v1889 = vpack.c.b16 %v1791, %v1789
    %v1890 = vpack.c.b16 %v1792, %v1790
    %v1891 = vpack.c.b16 %v1795, %v1793
    %v1892 = vpack.c.b16 %v1796, %v1794
    %v1893 = vpack.c.b16 %v1799, %v1797
    %v1894 = vpack.c.b16 %v1800, %v1798
    %v1895 = vpack.c.b16 %v1803, %v1801
    %v1896 = vpack.c.b16 %v1804, %v1802
    %v1897 = vpack.c.b16 %v1807, %v1805
    %v1898 = vpack.c.b16 %v1808, %v1806
    %v1899 = vpack.c.b16 %v1811, %v1809
    %v1900 = vpack.c.b16 %v1812, %v1810
    %v1901 = vpack.c.b16 %v1815, %v1813
    %v1902 = vpack.c.b16 %v1816, %v1814
    %v1903 = vpack.c.b16 %v1819, %v1817
    %v1904 = vpack.c.b16 %v1820, %v1818
    %v1905 = vpack.c.b16 %v1823, %v1821
    %v1906 = vpack.c.b16 %v1824, %v1822
    %v1907 = vpack.c.b16 %v1827, %v1825
    %v1908 = vpack.c.b16 %v1828, %v1826
    %v1909 = vpack.c.b16 %v1831, %v1829
    %v1910 = vpack.c.b16 %v1832, %v1830
    %v1911 = vpack.c.b16 %v1835, %v1833
    %v1912 = vpack.c.b16 %v1836, %v1834
    %v1913 = vpack.c.b16 %v1839, %v1837
    %v1914 = vpack.c.b16 %v1840, %v1838
    %v1915 = vpack.c.b16 %v1843, %v1841
    %v1916 = vpack.c.b16 %v1844, %v1842
    %v1917 = vpack.c.b16 %v1847, %v1845
    %v1918 = vpack.c.b16 %v1848, %v1846
    %v1919 = vpack.c.b16 %v1851, %v1849
    %v1920 = vpack.c.b16 %v1852, %v1850
    %v1921 = vpack.c.b16 %v1855, %v1853
    %v1922 = vpack.c.b16 %v1856, %v1854
    %v1923 = vpack.c.b16 %v1859, %v1857
    %v1924 = vpack.c.b16 %v1860, %v1858
    %1989 = vmatprep.subr.bf16.mxu0 %v1862
    %1990 = vmatpush1.bf16.msra.mxu0 %v1861
    %1991 = vmatprep.subr.bf16.mxu0 %v1864
    %1992 = vmatpush1.bf16.msra.mxu0 %v1863
    %1993 = vmatprep.subr.bf16.mxu0 %v1866
    %1994 = vmatpush1.bf16.msra.mxu0 %v1865
    %1995 = vmatprep.subr.bf16.mxu0 %v1868
    %1996 = vmatpush1.bf16.msra.mxu0 %v1867
    %1997 = vmatprep.subr.bf16.mxu0 %v1870
    %1998 = vmatpush1.bf16.msra.mxu0 %v1869
    %1999 = vmatprep.subr.bf16.mxu0 %v1872
    %2000 = vmatpush1.bf16.msra.mxu0 %v1871
    %2001 = vmatprep.subr.bf16.mxu0 %v1874
    %2002 = vmatpush1.bf16.msra.mxu0 %v1873
    %2003 = vmatprep.subr.bf16.mxu0 %v1876
    %2004 = vmatpush1.bf16.msra.mxu0 %v1875
    %2005 = vmatprep.subr.bf16.mxu0 %v1878
    %2006 = vmatpush1.bf16.msra.mxu0 %v1877
    %2007 = vmatprep.subr.bf16.mxu0 %v1880
    %2008 = vmatpush1.bf16.msra.mxu0 %v1879
    %2009 = vmatprep.subr.bf16.mxu0 %v1882
    %2010 = vmatpush1.bf16.msra.mxu0 %v1881
    %2011 = vmatprep.subr.bf16.mxu0 %v1884
    %2012 = vmatpush1.bf16.msra.mxu0 %v1883
    %2013 = vmatprep.subr.bf16.mxu0 %v1886
    %2014 = vmatpush1.bf16.msra.mxu0 %v1885
    %2015 = vmatprep.subr.bf16.mxu0 %v1888
    %2016 = vmatpush1.bf16.msra.mxu0 %v1887
    %2017 = vmatprep.subr.bf16.mxu0 %v1890
    %2018 = vmatpush1.bf16.msra.mxu0 %v1889
    %2019 = vmatprep.subr.bf16.mxu0 %v1892
    %2020 = vmatpush1.bf16.msra.mxu0 %v1891
    %2021 = vmatprep.mubr.bf16.mxu0 %v1590
    %2022 = vmatmul.mubr.bf16.gmra.mrb[0].mxu0 %v1589
    %v2023 = vpop.f32.mrb[0].mxu0
    %v2024 = vadd.f32 %v1662, %v2023
    %v2025 = vpop.f32.mrb[0].mxu0
    %v2026 = vadd.f32 %v1666, %v2025
    %v2027 = vpop.f32.mrb[0].mxu0
    %v2028 = vpop.f32.mrb[0].mxu0
    %2029 = vdwg.mxu0
    %2030 = vmatprep.subr.bf16.mxu0 %v1894
    %2031 = vmatpush1.bf16.msra.mxu0 %v1893
    %2032 = vmatprep.subr.bf16.mxu0 %v1896
    %2033 = vmatpush1.bf16.msra.mxu0 %v1895
    %2034 = vmatprep.subr.bf16.mxu0 %v1898
    %2035 = vmatpush1.bf16.msra.mxu0 %v1897
    %2036 = vmatprep.subr.bf16.mxu0 %v1900
    %2037 = vmatpush1.bf16.msra.mxu0 %v1899
    %2038 = vmatprep.subr.bf16.mxu0 %v1902
    %2039 = vmatpush1.bf16.msra.mxu0 %v1901
    %2040 = vmatprep.subr.bf16.mxu0 %v1904
    %2041 = vmatpush1.bf16.msra.mxu0 %v1903
    %2042 = vmatprep.subr.bf16.mxu0 %v1906
    %2043 = vmatpush1.bf16.msra.mxu0 %v1905
    %2044 = vmatprep.subr.bf16.mxu0 %v1908
    %2045 = vmatpush1.bf16.msra.mxu0 %v1907
    %2046 = vmatprep.subr.bf16.mxu0 %v1910
    %2047 = vmatpush1.bf16.msra.mxu0 %v1909
    %2048 = vmatprep.subr.bf16.mxu0 %v1912
    %2049 = vmatpush1.bf16.msra.mxu0 %v1911
    %2050 = vmatprep.subr.bf16.mxu0 %v1914
    %2051 = vmatpush1.bf16.msra.mxu0 %v1913
    %2052 = vmatprep.subr.bf16.mxu0 %v1916
    %2053 = vmatpush1.bf16.msra.mxu0 %v1915
    %2054 = vmatprep.subr.bf16.mxu0 %v1918
    %2055 = vmatpush1.bf16.msra.mxu0 %v1917
    %2056 = vmatprep.subr.bf16.mxu0 %v1920
    %2057 = vmatpush1.bf16.msra.mxu0 %v1919
    %2058 = vmatprep.subr.bf16.mxu0 %v1922
    %2059 = vmatpush1.bf16.msra.mxu0 %v1921
    %2060 = vmatprep.subr.bf16.mxu0 %v1924
    %2061 = vmatpush1.bf16.msra.mxu0 %v1923
    %2062 = vmatprep.mubr.bf16.mxu0 %v1592
    %2063 = vmatmul.mubr.bf16.gmra.mrb[0].mxu0 %v1591
    %v2064 = vpop.f32.mrb[0].mxu0
    %v2065 = vadd.f32 %v2024, %v2064
    %v2066 = vpop.f32.mrb[0].mxu0
    %v2067 = vadd.f32 %v2026, %v2066
    %v2068 = vpop.f32.mrb[0].mxu0
    %v2069 = vpop.f32.mrb[0].mxu0
    %2070 = vdwg.mxu0
    %v2071 = vmax.f32 %v2065, 0.0
    %v2072 = vmax.f32 %v2067, 0.0
    %v2073 = vpack.c.bf16 %v2071, %v2071
    %v2074 = vpack.c.bf16 %v2072, %v2072
    %v2075 = vld [vmem:[%s5] sm:$0xf]
    %v2076 = vld [vmem:[%s5 + $0x4] sm:$0xf]
    %v2077 = vld [vmem:[%s5 + $0x8] sm:$0xf]
    %v2078 = vld [vmem:[%s5 + $0xc] sm:$0xf]
    %v2079 = vld [vmem:[%s5 + $0x10] sm:$0xf]
    %v2080 = vld [vmem:[%s5 + $0x14] sm:$0xf]
    %v2081 = vld [vmem:[%s5 + $0x18] sm:$0xf]
    %v2082 = vld [vmem:[%s5 + $0x1c] sm:$0xf]
    %v2083 = vld [vmem:[%s5 + $0x20] sm:$0xf]
    %v2084 = vld [vmem:[%s5 + $0x24] sm:$0xf]
    %v2085 = vld [vmem:[%s5 + $0x28] sm:$0xf]
    %v2086 = vld [vmem:[%s5 + $0x2c] sm:$0xf]
    %v2087 = vld [vmem:[%s5 + $0x30] sm:$0xf]
    %v2088 = vld [vmem:[%s5 + $0x34] sm:$0xf]
    %v2089 = vld [vmem:[%s5 + $0x38] sm:$0xf]
    %v2090 = vld [vmem:[%s5 + $0x3c] sm:$0xf]
    %v2091 = vld [vmem:[%s5 + $0x40] sm:$0xf]
    %v2092 = vld [vmem:[%s5 + $0x44] sm:$0xf]
    %v2093 = vld [vmem:[%s5 + $0x48] sm:$0xf]
    %v2094 = vld [vmem:[%s5 + $0x4c] sm:$0xf]
    %v2095 = vld [vmem:[%s5 + $0x50] sm:$0xf]
    %v2096 = vld [vmem:[%s5 + $0x54] sm:$0xf]
    %v2097 = vld [vmem:[%s5 + $0x58] sm:$0xf]
    %v2098 = vld [vmem:[%s5 + $0x5c] sm:$0xf]
    %v2099 = vld [vmem:[%s5 + $0x60] sm:$0xf]
    %v2100 = vld [vmem:[%s5 + $0x64] sm:$0xf]
    %v2101 = vld [vmem:[%s5 + $0x68] sm:$0xf]
    %v2102 = vld [vmem:[%s5 + $0x6c] sm:$0xf]
    %v2103 = vld [vmem:[%s5 + $0x70] sm:$0xf]
    %v2104 = vld [vmem:[%s5 + $0x74] sm:$0xf]
    %v2105 = vld [vmem:[%s5 + $0x78] sm:$0xf]
    %v2106 = vld [vmem:[%s5 + $0x7c] sm:$0xf]
    %v2107 = vld [vmem:[%s6] sm:$0x1]
    %v2109 = vlaneseq
    %v2110 = vshrl.u32 %v2109, 7
    %v2111 = vsub.s32 0, %v2110
    %v2112 = vrot.slane %v2107, %v2111
    %v2146 = vunpack.c.l.b16 %v2075
    %v2147 = vunpack.c.l.b16 %v2076
    %v2148 = vunpack.c.l.b16 %v2077
    %v2149 = vunpack.c.l.b16 %v2078
    %v2150 = vunpack.c.l.b16 %v2079
    %v2151 = vunpack.c.l.b16 %v2080
    %v2152 = vunpack.c.l.b16 %v2081
    %v2153 = vunpack.c.l.b16 %v2082
    %v2154 = vunpack.c.l.b16 %v2083
    %v2155 = vunpack.c.l.b16 %v2084
    %v2156 = vunpack.c.l.b16 %v2085
    %v2157 = vunpack.c.l.b16 %v2086
    %v2158 = vunpack.c.l.b16 %v2087
    %v2159 = vunpack.c.l.b16 %v2088
    %v2160 = vunpack.c.l.b16 %v2089
    %v2161 = vunpack.c.l.b16 %v2090
    %v2162 = vunpack.c.l.b16 %v2091
    %v2163 = vunpack.c.l.b16 %v2092
    %v2164 = vunpack.c.l.b16 %v2093
    %v2165 = vunpack.c.l.b16 %v2094
    %v2166 = vunpack.c.l.b16 %v2095
    %v2167 = vunpack.c.l.b16 %v2096
    %v2168 = vunpack.c.l.b16 %v2097
    %v2169 = vunpack.c.l.b16 %v2098
    %v2170 = vunpack.c.l.b16 %v2099
    %v2171 = vunpack.c.l.b16 %v2100
    %v2172 = vunpack.c.l.b16 %v2101
    %v2173 = vunpack.c.l.b16 %v2102
    %v2174 = vunpack.c.l.b16 %v2103
    %v2175 = vunpack.c.l.b16 %v2104
    %v2176 = vunpack.c.l.b16 %v2105
    %v2177 = vunpack.c.l.b16 %v2106
    %v2178 = vpack.c.b16 %v2147, %v2146
    %v2179 = vpack.c.b16 %v2149, %v2148
    %v2180 = vpack.c.b16 %v2151, %v2150
    %v2181 = vpack.c.b16 %v2153, %v2152
    %v2182 = vpack.c.b16 %v2155, %v2154
    %v2183 = vpack.c.b16 %v2157, %v2156
    %v2184 = vpack.c.b16 %v2159, %v2158
    %v2185 = vpack.c.b16 %v2161, %v2160
    %v2186 = vpack.c.b16 %v2163, %v2162
    %v2187 = vpack.c.b16 %v2165, %v2164
    %v2188 = vpack.c.b16 %v2167, %v2166
    %v2189 = vpack.c.b16 %v2169, %v2168
    %v2190 = vpack.c.b16 %v2171, %v2170
    %v2191 = vpack.c.b16 %v2173, %v2172
    %v2192 = vpack.c.b16 %v2175, %v2174
    %v2193 = vpack.c.b16 %v2177, %v2176
    %2210 = vmatprep.subr.bf16.mxu0 0
    %2211 = vmatpush1.bf16.msra.mxu0 %v2178
    %2212 = vmatprep.subr.bf16.mxu0 0
    %2213 = vmatpush1.bf16.msra.mxu0 %v2179
    %2214 = vmatprep.subr.bf16.mxu0 0
    %2215 = vmatpush1.bf16.msra.mxu0 %v2180
    %2216 = vmatprep.subr.bf16.mxu0 0
    %2217 = vmatpush1.bf16.msra.mxu0 %v2181
    %2218 = vmatprep.subr.bf16.mxu0 0
    %2219 = vmatpush1.bf16.msra.mxu0 %v2182
    %2220 = vmatprep.subr.bf16.mxu0 0
    %2221 = vmatpush1.bf16.msra.mxu0 %v2183
    %2222 = vmatprep.subr.bf16.mxu0 0
    %2223 = vmatpush1.bf16.msra.mxu0 %v2184
    %2224 = vmatprep.subr.bf16.mxu0 0
    %2225 = vmatpush1.bf16.msra.mxu0 %v2185
    %2226 = vmatprep.subr.bf16.mxu0 0
    %2227 = vmatpush1.bf16.msra.mxu0 %v2186
    %2228 = vmatprep.subr.bf16.mxu0 0
    %2229 = vmatpush1.bf16.msra.mxu0 %v2187
    %2230 = vmatprep.subr.bf16.mxu0 0
    %2231 = vmatpush1.bf16.msra.mxu0 %v2188
    %2232 = vmatprep.subr.bf16.mxu0 0
    %2233 = vmatpush1.bf16.msra.mxu0 %v2189
    %2234 = vmatprep.subr.bf16.mxu0 0
    %2235 = vmatpush1.bf16.msra.mxu0 %v2190
    %2236 = vmatprep.subr.bf16.mxu0 0
    %2237 = vmatpush1.bf16.msra.mxu0 %v2191
    %2238 = vmatprep.subr.bf16.mxu0 0
    %2239 = vmatpush1.bf16.msra.mxu0 %v2192
    %2240 = vmatprep.subr.bf16.mxu0 0
    %2241 = vmatpush1.bf16.msra.mxu0 %v2193
    %2242 = vmatprep.mubr.bf16.mxu0 %v2074
    %2243 = vmatmul.mubr.bf16.gmra.mrb[0].mxu0 %v2073
    %v2244 = vpop.f32.mrb[0].mxu0
    %v2245 = vadd.f32 %v2112, %v2244
    %v2246 = vpop.f32.mrb[0].mxu0
    %v2247 = vpop.f32.mrb[0].mxu0
    %v2248 = vpop.f32.mrb[0].mxu0
    %2249 = vdwg.mxu0
    %v2250 = vpack.c.bf16 %v2245, %v2245
    %2251 = vst [vmem:[%s7] sm:$0xf] %v2250
    // Predicated region
    $region34: #{simple_dnn_2.1} parent=1 // pred_check
      _
    $region35: #{simple_dnn_2.1} parent=1 // pred_check_branch
      %2253 = sbr.rel (0) target = $region37
    $region36: #{simple_dnn_2.1} parent=1 // pred_region
      _
    $region37: #{simple_dnn_2.1} parent=1 // pred_fallthru
      _
    // Predicated region
    $region38: #{simple_dnn_2.1} parent=1 // pred_check
      _
    $region39: #{simple_dnn_2.1} parent=1 // pred_check_branch
      %2255 = sbr.rel (0) target = $region41
    $region40: #{simple_dnn_2.1} parent=1 // pred_region
      _
    $region41: #{simple_dnn_2.1} parent=1 // pred_fallthru
      _
    %2256 = vsyncpa [#allocation3], 1

</llo_original>
